<compile_context>
chip_gen: v6e
topology: v6e:2x2x1
jax: 0.10.0
libtpu: 0.0.40
codegen_flags: <defaults>
</compile_context>

<pallas_src>
import functools

import jax
import jax.numpy as jnp
import numpy as np
from jax.experimental import pallas as pl
from jax.experimental.pallas import tpu as pltpu


def _sigmoid(x):
    # Numerically stable logistic: one EUP exp, one exact divide, one select.
    z = jnp.exp(-jnp.abs(x))
    r = 1.0 / (1.0 + z)
    return jnp.where(x >= 0, r, 1.0 - r)


# -----------------------------------------------------------------------------
# Pallas kernel: one graph per grid step, ALL ensemble members lane-stacked.
# -----------------------------------------------------------------------------
def _regressor_kernel(x_ref, a_ref, w0_ref, wr_ref, sw0_ref, swh_ref,
                      tw0_ref, twh_ref, f1_ref, f2_ref, bias_ref,
                      preds_ref, embeds_ref, *, depth: int, n_out: int):
    x = x_ref[...]                       # (N, F)  this graph's node features
    a = a_ref[...]                       # (N, N)  D^-1/2 (A+I) D^-1/2

    def bias(row):                       # (1, E*H) broadcast row from the slab
        return bias_ref[row:row + 1, :]

    # ---- depth x (fused Linear+GCN -> aggregate -> tanh), skip chunks ------
    hs = []
    h = x
    for d in range(depth):
        if d == 0:
            z = jnp.dot(x, w0_ref[...], preferred_element_type=jnp.float32)
        else:
            z = jnp.dot(h, wr_ref[d - 1], preferred_element_type=jnp.float32)
        z = z + bias(2 * d)                                   # fused lin bias
        z = jnp.dot(a, z, preferred_element_type=jnp.float32) + bias(2 * d + 1)
        h = jnp.tanh(z)
        hs.append(h)                                          # (N, E*H)

    cat_h = hs[0] if depth == 1 else jnp.concatenate(hs, axis=-1)  # (N, depth*E*H)

    # ---- gated pooling head: one wide matmul per gate for all chunks -------
    sig = (jnp.dot(x, sw0_ref[...], preferred_element_type=jnp.float32)
           + jnp.dot(cat_h, swh_ref[...], preferred_element_type=jnp.float32)
           + bias(2 * depth))
    tnh = (jnp.dot(x, tw0_ref[...], preferred_element_type=jnp.float32)
           + jnp.dot(cat_h, twh_ref[...], preferred_element_type=jnp.float32)
           + bias(2 * depth + 1))

    gated = _sigmoid(sig) * jnp.tanh(tnh)                     # (N, E*H)
    pooled = jnp.sum(gated, axis=0, keepdims=True)            # (1, E*H) node-sum
    embeds = jnp.tanh(pooled)
    embeds_ref[...] = embeds.astype(embeds_ref.dtype)

    # ---- final MLP head (block-diag over members), dropout = eval identity -
    # TODO(synk): training-mode dropout (stochastic masking) not implemented.
    h1 = jnp.maximum(
        jnp.dot(embeds, f1_ref[...], preferred_element_type=jnp.float32)
        + bias(2 * depth + 2), 0.0)
    p = (jnp.dot(h1, f2_ref[...], preferred_element_type=jnp.float32)
         + bias_ref[2 * depth + 3:2 * depth + 4, :n_out])     # (1, E*2)
    col = jax.lax.broadcasted_iota(jnp.int32, p.shape, 1)
    p = jnp.where((col & 1) == 0, _sigmoid(p), p)   # sigmoid on col 0 per member
    preds_ref[...] = p.astype(preds_ref.dtype)


# -----------------------------------------------------------------------------
# Wrapper: preprocessing (fold/stack/block-diag weights) + one pallas_call.
# -----------------------------------------------------------------------------
@jax.jit
def regressor_ensemble_forward(x, adj, params):
    E, F, H = params["lin0_w"].shape
    depth = params["gcn_w"].shape[1]
    B, N, _ = x.shape
    EH = E * H
    HI = jax.lax.Precision.HIGHEST

    # ---- shared GCN normalization, computed once (outside the kernel) ------
    eye = jnp.eye(N, dtype=adj.dtype)
    a = adj + eye[None]
    deg = jnp.sum(a, axis=-1, keepdims=True)
    dinv = jax.lax.rsqrt(jnp.maximum(deg, 1e-12))
    a_hat = a * dinv * jnp.swapaxes(dinv, -1, -2)              # (B, N, N)

    eye_e = jnp.eye(E, dtype=x.dtype)

    def lane_stack(w):       # (E, K, O) -> (K, E*O): members side-by-side in lanes
        return jnp.transpose(w, (1, 0, 2)).reshape(w.shape[1], E * w.shape[2])

    def block_diag(w):       # (E, K, O) -> (E*K, E*O) block-diagonal over members
        k, o = w.shape[1], w.shape[2]
        return (w[:, :, None, :] * eye_e[:, None, :, None]).reshape(E * k, E * o)

    gcn_w, gcn_b = params["gcn_w"], params["gcn_b"]

    # fold each layer's Linear into the following GCN weight (HIGHEST precision)
    w0 = lane_stack(jnp.einsum("efh,ehk->efk", params["lin0_w"], gcn_w[:, 0],
                               precision=HI))
    b0 = jnp.einsum("eh,ehk->ek", params["lin0_b"], gcn_w[:, 0],
                    precision=HI).reshape(EH)
    wr_list, br_list = [], []
    for d in range(1, depth):
        fw = jnp.einsum("ehk,ekm->ehm", params["linr_w"][:, d - 1], gcn_w[:, d],
                        precision=HI)
        wr_list.append(block_diag(fw))
        br_list.append(jnp.einsum("eh,ehk->ek", params["linr_b"][:, d - 1],
                                  gcn_w[:, d], precision=HI).reshape(EH))
    wr = (jnp.stack(wr_list) if depth > 1
          else jnp.zeros((1, EH, EH), x.dtype))      # dummy slot, never read

    # gated head: lane-stacked x-chunk weights + block-diag skip-chunk weights
    sw0 = lane_stack(params["sig_w"][:, :F, :])
    tw0 = lane_stack(params["tanh_w"][:, :F, :])
    sw_h = jnp.concatenate(
        [block_diag(params["sig_w"][:, F + d * H:F + (d + 1) * H, :])
         for d in range(depth)], axis=0)             # (depth*EH, EH)
    tw_h = jnp.concatenate(
        [block_diag(params["tanh_w"][:, F + d * H:F + (d + 1) * H, :])
         for d in range(depth)], axis=0)
    f1 = block_diag(params["fin1_w"])                # (EH, EH)
    f2 = block_diag(params["fin2_w"])                # (EH, 2E)

    # pack every small bias vector into ONE (R, EH) slab -> single DMA
    rows = [b0, gcn_b[:, 0].reshape(EH)]
    for d in range(1, depth):
        rows += [br_list[d - 1], gcn_b[:, d].reshape(EH)]
    rows += [params["sig_b"].reshape(EH), params["tanh_b"].reshape(EH),
             params["fin1_b"].reshape(EH),
             jnp.pad(params["fin2_b"].reshape(2 * E), (0, EH - 2 * E))]
    biases = jnp.stack(rows)                         # (2*depth+4, EH)

    nr = wr.shape[0]
    dhe = depth * EH
    in_specs = [
        pl.BlockSpec((None, N, F), lambda b: (b, 0, 0)),       # x     (per graph)
        pl.BlockSpec((None, N, N), lambda b: (b, 0, 0)),       # a_hat (per graph)
        pl.BlockSpec((F, EH), lambda b: (0, 0)),               # w0    (resident)
        pl.BlockSpec((nr, EH, EH), lambda b: (0, 0, 0)),       # wr
        pl.BlockSpec((F, EH), lambda b: (0, 0)),               # sw0
        pl.BlockSpec((dhe, EH), lambda b: (0, 0)),             # sw_h
        pl.BlockSpec((F, EH), lambda b: (0, 0)),               # tw0
        pl.BlockSpec((dhe, EH), lambda b: (0, 0)),             # tw_h
        pl.BlockSpec((EH, EH), lambda b: (0, 0)),              # f1
        pl.BlockSpec((EH, 2 * E), lambda b: (0, 0)),           # f2
        pl.BlockSpec((2 * depth + 4, EH), lambda b: (0, 0)),   # bias slab
    ]
    out_specs = (
        pl.BlockSpec((None, 1, 2 * E), lambda b: (b, 0, 0)),   # preds
        pl.BlockSpec((None, 1, EH), lambda b: (b, 0, 0)),      # embeds
    )

    preds_flat, embeds_flat = pl.pallas_call(
        functools.partial(_regressor_kernel, depth=depth, n_out=2 * E),
        grid=(B,),
        out_shape=(jax.ShapeDtypeStruct((B, 1, 2 * E), jnp.float32),
                   jax.ShapeDtypeStruct((B, 1, EH), jnp.float32)),
        in_specs=in_specs,
        out_specs=out_specs,
        compiler_params=pltpu.CompilerParams(
            dimension_semantics=("parallel",),      # megacore split on v7x
            vmem_limit_bytes=32 * 1024 * 1024),     # explicit scoped limit (v5e)
    )(x, a_hat, w0, wr, sw0, sw_h, tw0, tw_h, f1, f2, biases)

    # unpack lane-stacked members: (B, 1, E*K) -> (E, B, K)
    preds = preds_flat.reshape(B, E, 2).transpose(1, 0, 2)
    embeds = embeds_flat.reshape(B, E, H).transpose(1, 0, 2)
    return preds, embeds


# -----------------------------------------------------------------------------
# Deterministic parameter construction + pure-JAX reference.
# -----------------------------------------------------------------------------
def init_params(key, max_feat_num, depth, nhid, ensemble_size):
    assert depth >= 1
    dim = max_feat_num + depth * nhid
    nr = max(depth - 1, 1)  # dummy slot when depth == 1 (never read)

    def u(key, shape, fan_in):
        lim = 1.0 / np.sqrt(fan_in)
        return jax.random.uniform(key, shape, jnp.float32, -lim, lim)

    ks = jax.random.split(key, 14)
    E = ensemble_size
    return {
        "lin0_w": u(ks[0], (E, max_feat_num, nhid), max_feat_num),
        "lin0_b": u(ks[1], (E, nhid), max_feat_num),
        "linr_w": u(ks[2], (E, nr, nhid, nhid), nhid),
        "linr_b": u(ks[3], (E, nr, nhid), nhid),
        "gcn_w": u(ks[4], (E, depth, nhid, nhid), nhid),
        "gcn_b": u(ks[5], (E, depth, nhid), nhid),
        "sig_w": u(ks[6], (E, dim, nhid), dim),
        "sig_b": u(ks[7], (E, nhid), dim),
        "tanh_w": u(ks[8], (E, dim, nhid), dim),
        "tanh_b": u(ks[9], (E, nhid), dim),
        "fin1_w": u(ks[10], (E, nhid, nhid), nhid),
        "fin1_b": u(ks[11], (E, nhid), nhid),
        "fin2_w": u(ks[12], (E, nhid, 2), nhid),
        "fin2_b": u(ks[13], (E, 2), nhid),
    }


def regressor_ref(x, adj, params, e, depth):
    """Pure-JAX reference for ensemble member e (mirrors the torch forward)."""
    N = x.shape[1]
    a = adj + jnp.eye(N, dtype=adj.dtype)[None]
    dinv = jax.lax.rsqrt(jnp.maximum(jnp.sum(a, -1, keepdims=True), 1e-12))
    a_hat = a * dinv * jnp.swapaxes(dinv, -1, -2)

    h = x
    xs = [x]
    for d in range(depth):
        if d == 0:
            w, b = params["lin0_w"][e], params["lin0_b"][e]
        else:
            w, b = params["linr_w"][e, d - 1], params["linr_b"][e, d - 1]
        h = jnp.einsum("bnf,fh->bnh", h, w) + b
        h = jnp.einsum("bij,bjh->bih", a_hat,
                       jnp.einsum("bnf,fh->bnh", h, params["gcn_w"][e, d]))
        h = jnp.tanh(h + params["gcn_b"][e, d])
        xs.append(h)
    cat = jnp.concatenate(xs, axis=-1)
    sig = jax.nn.sigmoid(jnp.einsum("bnf,fh->bnh", cat, params["sig_w"][e])
                         + params["sig_b"][e])
    tnh = jnp.tanh(jnp.einsum("bnf,fh->bnh", cat, params["tanh_w"][e])
                   + params["tanh_b"][e])
    embeds = jnp.tanh(jnp.sum(sig * tnh, axis=1))
    h1 = jnp.maximum(embeds @ params["fin1_w"][e] + params["fin1_b"][e], 0.0)
    p = h1 @ params["fin2_w"][e] + params["fin2_b"][e]
    p = p.at[:, 0].set(jax.nn.sigmoid(p[:, 0]))
    return p, embeds


# -----------------------------------------------------------------------------
if __name__ == "__main__":
    MAX_FEAT, DEPTH, NHID, DROPOUT, ENSEMBLE = 4, 2, 32, 0.1, 3
    B, N = 2, 8

    key = jax.random.PRNGKey(0)
    kx, kadj, kp = jax.random.split(key, 3)

    # node features [B, N, F]
    x = jax.random.normal(kx, (B, N, MAX_FEAT), jnp.float32)

    # symmetric 0/1 adjacency with empty diagonal, [B, N, N]
    r = jax.random.bernoulli(kadj, 0.4, (B, N, N))
    adj = jnp.logical_or(r, jnp.swapaxes(r, -1, -2)).astype(jnp.float32)
    adj = adj * (1.0 - jnp.eye(N, dtype=jnp.float32)[None])

    params = init_params(kp, MAX_FEAT, DEPTH, NHID, ENSEMBLE)

    preds, embeds = regressor_ensemble_forward(x, adj, params)
    jax.block_until_ready((preds, embeds))

    # correctness check vs. pure-JAX reference
    for e in range(ENSEMBLE):
        p_ref, emb_ref = regressor_ref(x, adj, params, e, DEPTH)
        np.testing.assert_allclose(np.asarray(preds[e]), np.asarray(p_ref),
                                   rtol=1e-5, atol=1e-5)
        np.testing.assert_allclose(np.asarray(embeds[e]), np.asarray(emb_ref),
                                   rtol=1e-5, atol=1e-5)

    print("KERNEL_OK")
</pallas_src>

<mosaic_0001>
module attributes {stable_mosaic.version = 11 : i64} {
  func.func @_regressor_kernel(%arg0: i32, %arg1: memref<1x8x4xf32, #tpu.memory_space<vmem>>, %arg2: memref<1x8x8xf32, #tpu.memory_space<vmem>>, %arg3: memref<4x96xf32, #tpu.memory_space<vmem>>, %arg4: memref<1x96x96xf32, #tpu.memory_space<vmem>>, %arg5: memref<4x96xf32, #tpu.memory_space<vmem>>, %arg6: memref<192x96xf32, #tpu.memory_space<vmem>>, %arg7: memref<4x96xf32, #tpu.memory_space<vmem>>, %arg8: memref<192x96xf32, #tpu.memory_space<vmem>>, %arg9: memref<96x96xf32, #tpu.memory_space<vmem>>, %arg10: memref<96x6xf32, #tpu.memory_space<vmem>>, %arg11: memref<8x96xf32, #tpu.memory_space<vmem>>, %arg12: memref<1x1x6xf32, #tpu.memory_space<vmem>>, %arg13: memref<1x1x96xf32, #tpu.memory_space<vmem>>) attributes {dimension_semantics = [#tpu.dimension_semantics<parallel>], iteration_bounds = array<i64: 2>, scalar_prefetch = 0 : i64, scratch_operands = 0 : i64, tpu.core_type = #tpu.core_type<tc>, window_params = [{transform_indices = @transform_0, window_bounds = array<i64: 1, 8, 4>}, {transform_indices = @transform_1, window_bounds = array<i64: 1, 8, 8>}, {pipeline_mode = #tpu.pipeline_mode<synchronous>, transform_indices = @transform_2, window_bounds = array<i64: 4, 96>}, {pipeline_mode = #tpu.pipeline_mode<synchronous>, transform_indices = @transform_3, window_bounds = array<i64: 1, 96, 96>}, {pipeline_mode = #tpu.pipeline_mode<synchronous>, transform_indices = @transform_4, window_bounds = array<i64: 4, 96>}, {pipeline_mode = #tpu.pipeline_mode<synchronous>, transform_indices = @transform_5, window_bounds = array<i64: 192, 96>}, {pipeline_mode = #tpu.pipeline_mode<synchronous>, transform_indices = @transform_6, window_bounds = array<i64: 4, 96>}, {pipeline_mode = #tpu.pipeline_mode<synchronous>, transform_indices = @transform_7, window_bounds = array<i64: 192, 96>}, {pipeline_mode = #tpu.pipeline_mode<synchronous>, transform_indices = @transform_8, window_bounds = array<i64: 96, 96>}, {pipeline_mode = #tpu.pipeline_mode<synchronous>, transform_indices = @transform_9, window_bounds = array<i64: 96, 6>}, {pipeline_mode = #tpu.pipeline_mode<synchronous>, transform_indices = @transform_10, window_bounds = array<i64: 8, 96>}, {transform_indices = @transform_11, window_bounds = array<i64: 1, 1, 6>}, {transform_indices = @transform_12, window_bounds = array<i64: 1, 1, 96>}]} {
    %c0 = arith.constant 0 : index
    %c0_0 = arith.constant 0 : index
    %c0_1 = arith.constant 0 : index
    %0 = vector.load %arg1[%c0, %c0_0, %c0_1] : memref<1x8x4xf32, #tpu.memory_space<vmem>>, vector<1x8x4xf32>
    %1 = vector.shape_cast %0 : vector<1x8x4xf32> to vector<8x4xf32>
    %c0_2 = arith.constant 0 : index
    %c0_3 = arith.constant 0 : index
    %c0_4 = arith.constant 0 : index
    %2 = vector.load %arg2[%c0_2, %c0_3, %c0_4] : memref<1x8x8xf32, #tpu.memory_space<vmem>>, vector<1x8x8xf32>
    %3 = vector.shape_cast %2 : vector<1x8x8xf32> to vector<8x8xf32>
    %c0_5 = arith.constant 0 : index
    %c0_6 = arith.constant 0 : index
    %4 = vector.load %arg3[%c0_5, %c0_6] : memref<4x96xf32, #tpu.memory_space<vmem>>, vector<4x96xf32>
    %cst = arith.constant dense<0.000000e+00> : vector<8x96xf32>
    %5 = tpu.matmul %1, %4, %cst {dimension_numbers = #tpu.dot_dimension_numbers<[1], [0], [0], [1], [0, 0, 1, 1], [], []>} : vector<8x4xf32>, vector<4x96xf32>, vector<8x96xf32> -> vector<8x96xf32>
    %c0_7 = arith.constant 0 : index
    %c0_8 = arith.constant 0 : index
    %6 = vector.load %arg11[%c0_7, %c0_8] : memref<8x96xf32, #tpu.memory_space<vmem>>, vector<1x96xf32>
    %7 = vector.broadcast %6 : vector<1x96xf32> to vector<8x96xf32>
    %8 = arith.addf %5, %7 : vector<8x96xf32>
    %cst_9 = arith.constant dense<0.000000e+00> : vector<8x96xf32>
    %9 = tpu.matmul %3, %8, %cst_9 {dimension_numbers = #tpu.dot_dimension_numbers<[1], [0], [0], [1], [0, 0, 1, 1], [], []>} : vector<8x8xf32>, vector<8x96xf32>, vector<8x96xf32> -> vector<8x96xf32>
    %c1 = arith.constant 1 : index
    %c0_10 = arith.constant 0 : index
    %10 = vector.load %arg11[%c1, %c0_10] : memref<8x96xf32, #tpu.memory_space<vmem>>, vector<1x96xf32>
    %11 = vector.broadcast %10 : vector<1x96xf32> to vector<8x96xf32>
    %12 = arith.addf %9, %11 : vector<8x96xf32>
    %13 = math.tanh %12 : vector<8x96xf32>
    %c0_11 = arith.constant 0 : index
    %c0_12 = arith.constant 0 : index
    %c0_13 = arith.constant 0 : index
    %14 = vector.load %arg4[%c0_11, %c0_12, %c0_13] : memref<1x96x96xf32, #tpu.memory_space<vmem>>, vector<1x96x96xf32>
    %15 = vector.shape_cast %14 : vector<1x96x96xf32> to vector<96x96xf32>
    %cst_14 = arith.constant dense<0.000000e+00> : vector<8x96xf32>
    %16 = tpu.matmul %13, %15, %cst_14 {dimension_numbers = #tpu.dot_dimension_numbers<[1], [0], [0], [1], [0, 0, 1, 1], [], []>} : vector<8x96xf32>, vector<96x96xf32>, vector<8x96xf32> -> vector<8x96xf32>
    %c2 = arith.constant 2 : index
    %c0_15 = arith.constant 0 : index
    %17 = vector.load %arg11[%c2, %c0_15] : memref<8x96xf32, #tpu.memory_space<vmem>>, vector<1x96xf32>
    %18 = vector.broadcast %17 : vector<1x96xf32> to vector<8x96xf32>
    %19 = arith.addf %16, %18 : vector<8x96xf32>
    %cst_16 = arith.constant dense<0.000000e+00> : vector<8x96xf32>
    %20 = tpu.matmul %3, %19, %cst_16 {dimension_numbers = #tpu.dot_dimension_numbers<[1], [0], [0], [1], [0, 0, 1, 1], [], []>} : vector<8x8xf32>, vector<8x96xf32>, vector<8x96xf32> -> vector<8x96xf32>
    %c3 = arith.constant 3 : index
    %c0_17 = arith.constant 0 : index
    %21 = vector.load %arg11[%c3, %c0_17] : memref<8x96xf32, #tpu.memory_space<vmem>>, vector<1x96xf32>
    %22 = vector.broadcast %21 : vector<1x96xf32> to vector<8x96xf32>
    %23 = arith.addf %20, %22 : vector<8x96xf32>
    %24 = math.tanh %23 : vector<8x96xf32>
    %25 = tpu.concatenate %13, %24 in 1 : vector<8x96xf32>, vector<8x96xf32> -> vector<8x192xf32>
    %c0_18 = arith.constant 0 : index
    %c0_19 = arith.constant 0 : index
    %26 = vector.load %arg5[%c0_18, %c0_19] : memref<4x96xf32, #tpu.memory_space<vmem>>, vector<4x96xf32>
    %cst_20 = arith.constant dense<0.000000e+00> : vector<8x96xf32>
    %27 = tpu.matmul %1, %26, %cst_20 {dimension_numbers = #tpu.dot_dimension_numbers<[1], [0], [0], [1], [0, 0, 1, 1], [], []>} : vector<8x4xf32>, vector<4x96xf32>, vector<8x96xf32> -> vector<8x96xf32>
    %c0_21 = arith.constant 0 : index
    %c0_22 = arith.constant 0 : index
    %28 = vector.load %arg6[%c0_21, %c0_22] : memref<192x96xf32, #tpu.memory_space<vmem>>, vector<192x96xf32>
    %cst_23 = arith.constant dense<0.000000e+00> : vector<8x96xf32>
    %29 = tpu.matmul %25, %28, %cst_23 {dimension_numbers = #tpu.dot_dimension_numbers<[1], [0], [0], [1], [0, 0, 1, 1], [], []>} : vector<8x192xf32>, vector<192x96xf32>, vector<8x96xf32> -> vector<8x96xf32>
    %30 = arith.addf %27, %29 : vector<8x96xf32>
    %c4 = arith.constant 4 : index
    %c0_24 = arith.constant 0 : index
    %31 = vector.load %arg11[%c4, %c0_24] : memref<8x96xf32, #tpu.memory_space<vmem>>, vector<1x96xf32>
    %32 = vector.broadcast %31 : vector<1x96xf32> to vector<8x96xf32>
    %33 = arith.addf %30, %32 : vector<8x96xf32>
    %c0_25 = arith.constant 0 : index
    %c0_26 = arith.constant 0 : index
    %34 = vector.load %arg7[%c0_25, %c0_26] : memref<4x96xf32, #tpu.memory_space<vmem>>, vector<4x96xf32>
    %cst_27 = arith.constant dense<0.000000e+00> : vector<8x96xf32>
    %35 = tpu.matmul %1, %34, %cst_27 {dimension_numbers = #tpu.dot_dimension_numbers<[1], [0], [0], [1], [0, 0, 1, 1], [], []>} : vector<8x4xf32>, vector<4x96xf32>, vector<8x96xf32> -> vector<8x96xf32>
    %c0_28 = arith.constant 0 : index
    %c0_29 = arith.constant 0 : index
    %36 = vector.load %arg8[%c0_28, %c0_29] : memref<192x96xf32, #tpu.memory_space<vmem>>, vector<192x96xf32>
    %cst_30 = arith.constant dense<0.000000e+00> : vector<8x96xf32>
    %37 = tpu.matmul %25, %36, %cst_30 {dimension_numbers = #tpu.dot_dimension_numbers<[1], [0], [0], [1], [0, 0, 1, 1], [], []>} : vector<8x192xf32>, vector<192x96xf32>, vector<8x96xf32> -> vector<8x96xf32>
    %38 = arith.addf %35, %37 : vector<8x96xf32>
    %c5 = arith.constant 5 : index
    %c0_31 = arith.constant 0 : index
    %39 = vector.load %arg11[%c5, %c0_31] : memref<8x96xf32, #tpu.memory_space<vmem>>, vector<1x96xf32>
    %40 = vector.broadcast %39 : vector<1x96xf32> to vector<8x96xf32>
    %41 = arith.addf %38, %40 : vector<8x96xf32>
    %42 = math.absf %33 : vector<8x96xf32>
    %cst_32 = arith.constant 0.000000e+00 : f32
    %43 = vector.broadcast %cst_32 : f32 to vector<8x96xf32>
    %44 = arith.subf %43, %42 : vector<8x96xf32>
    %45 = math.exp %44 : vector<8x96xf32>
    %cst_33 = arith.constant 1.000000e+00 : f32
    %46 = vector.broadcast %cst_33 : f32 to vector<8x96xf32>
    %47 = arith.addf %46, %45 : vector<8x96xf32>
    %cst_34 = arith.constant 1.000000e+00 : f32
    %48 = vector.broadcast %cst_34 : f32 to vector<8x96xf32>
    %49 = arith.divf %48, %47 : vector<8x96xf32>
    %cst_35 = arith.constant 0.000000e+00 : f32
    %50 = vector.broadcast %cst_35 : f32 to vector<8x96xf32>
    %51 = arith.cmpf oge, %33, %50 : vector<8x96xf32>
    %cst_36 = arith.constant 1.000000e+00 : f32
    %52 = vector.broadcast %cst_36 : f32 to vector<8x96xf32>
    %53 = arith.subf %52, %49 : vector<8x96xf32>
    %54 = arith.select %51, %49, %53 : vector<8x96xi1>, vector<8x96xf32>
    %55 = math.tanh %41 : vector<8x96xf32>
    %56 = arith.mulf %54, %55 : vector<8x96xf32>
    %cst_37 = arith.constant dense<0.000000e+00> : vector<96xf32>
    %57 = vector.multi_reduction <add>, %56, %cst_37 [0] : vector<8x96xf32> to vector<96xf32>
    %58 = vector.shape_cast %57 : vector<96xf32> to vector<1x96xf32>
    %59 = math.tanh %58 : vector<1x96xf32>
    %c0_38 = arith.constant 0 : index
    %c0_39 = arith.constant 0 : index
    %c0_40 = arith.constant 0 : index
    %60 = vector.load %arg13[%c0_38, %c0_39, %c0_40] : memref<1x1x96xf32, #tpu.memory_space<vmem>>, vector<1x1x96xf32>
    %61 = vector.shape_cast %60 : vector<1x1x96xf32> to vector<1x96xf32>
    %62 = vector.shape_cast %59 : vector<1x96xf32> to vector<1x1x96xf32>
    tpu.vector_store %arg13[%c0_38, %c0_39, %c0_40], %62 {strides = array<i32>} : memref<1x1x96xf32, #tpu.memory_space<vmem>>, vector<1x1x96xf32>,
    %c0_41 = arith.constant 0 : index
    %c0_42 = arith.constant 0 : index
    %63 = vector.load %arg9[%c0_41, %c0_42] : memref<96x96xf32, #tpu.memory_space<vmem>>, vector<96x96xf32>
    %cst_43 = arith.constant dense<0.000000e+00> : vector<1x96xf32>
    %64 = tpu.matmul %59, %63, %cst_43 {dimension_numbers = #tpu.dot_dimension_numbers<[1], [0], [0], [1], [0, 0, 1, 1], [], []>} : vector<1x96xf32>, vector<96x96xf32>, vector<1x96xf32> -> vector<1x96xf32>
    %c6 = arith.constant 6 : index
    %c0_44 = arith.constant 0 : index
    %65 = vector.load %arg11[%c6, %c0_44] : memref<8x96xf32, #tpu.memory_space<vmem>>, vector<1x96xf32>
    %66 = arith.addf %64, %65 : vector<1x96xf32>
    %cst_45 = arith.constant 0.000000e+00 : f32
    %67 = vector.broadcast %cst_45 : f32 to vector<1x96xf32>
    %68 = arith.maximumf %66, %67 : vector<1x96xf32>
    %c0_46 = arith.constant 0 : index
    %c0_47 = arith.constant 0 : index
    %69 = vector.load %arg10[%c0_46, %c0_47] : memref<96x6xf32, #tpu.memory_space<vmem>>, vector<96x6xf32>
    %cst_48 = arith.constant dense<0.000000e+00> : vector<1x6xf32>
    %70 = tpu.matmul %68, %69, %cst_48 {dimension_numbers = #tpu.dot_dimension_numbers<[1], [0], [0], [1], [0, 0, 1, 1], [], []>} : vector<1x96xf32>, vector<96x6xf32>, vector<1x6xf32> -> vector<1x6xf32>
    %c7 = arith.constant 7 : index
    %c0_49 = arith.constant 0 : index
    %71 = vector.load %arg11[%c7, %c0_49] : memref<8x96xf32, #tpu.memory_space<vmem>>, vector<1x6xf32>
    %72 = arith.addf %70, %71 : vector<1x6xf32>
    %73 = tpu.iota {dimensions = array<i32: 1>} : vector<1x6xi32>
    %c1_i32 = arith.constant 1 : i32
    %74 = vector.broadcast %c1_i32 : i32 to vector<1x6xi32>
    %75 = arith.andi %73, %74 : vector<1x6xi32>
    %c0_i32 = arith.constant 0 : i32
    %76 = vector.broadcast %c0_i32 : i32 to vector<1x6xi32>
    %77 = arith.cmpi eq, %75, %76 : vector<1x6xi32>
    %78 = math.absf %72 : vector<1x6xf32>
    %cst_50 = arith.constant 0.000000e+00 : f32
    %79 = vector.broadcast %cst_50 : f32 to vector<1x6xf32>
    %80 = arith.subf %79, %78 : vector<1x6xf32>
    %81 = math.exp %80 : vector<1x6xf32>
    %cst_51 = arith.constant 1.000000e+00 : f32
    %82 = vector.broadcast %cst_51 : f32 to vector<1x6xf32>
    %83 = arith.addf %82, %81 : vector<1x6xf32>
    %cst_52 = arith.constant 1.000000e+00 : f32
    %84 = vector.broadcast %cst_52 : f32 to vector<1x6xf32>
    %85 = arith.divf %84, %83 : vector<1x6xf32>
    %cst_53 = arith.constant 0.000000e+00 : f32
    %86 = vector.broadcast %cst_53 : f32 to vector<1x6xf32>
    %87 = arith.cmpf oge, %72, %86 : vector<1x6xf32>
    %cst_54 = arith.constant 1.000000e+00 : f32
    %88 = vector.broadcast %cst_54 : f32 to vector<1x6xf32>
    %89 = arith.subf %88, %85 : vector<1x6xf32>
    %90 = arith.select %87, %85, %89 : vector<1x6xi1>, vector<1x6xf32>
    %91 = arith.select %77, %90, %72 : vector<1x6xi1>, vector<1x6xf32>
    %c0_55 = arith.constant 0 : index
    %c0_56 = arith.constant 0 : index
    %c0_57 = arith.constant 0 : index
    %92 = vector.load %arg12[%c0_55, %c0_56, %c0_57] : memref<1x1x6xf32, #tpu.memory_space<vmem>>, vector<1x1x6xf32>
    %93 = vector.shape_cast %92 : vector<1x1x6xf32> to vector<1x6xf32>
    %94 = vector.shape_cast %91 : vector<1x6xf32> to vector<1x1x6xf32>
    tpu.vector_store %arg12[%c0_55, %c0_56, %c0_57], %94 {strides = array<i32>} : memref<1x1x6xf32, #tpu.memory_space<vmem>>, vector<1x1x6xf32>,
    return
  }
  func.func @transform_0(%arg0: i32) -> (i32, i32, i32) {
    %c0_i32 = arith.constant 0 : i32
    %c0_i32_0 = arith.constant 0 : i32
    %c0_i32_1 = arith.constant 0 : i32
    return %arg0, %c0_i32, %c0_i32_0 : i32, i32, i32
  }
  func.func @transform_1(%arg0: i32) -> (i32, i32, i32) {
    %c0_i32 = arith.constant 0 : i32
    %c0_i32_0 = arith.constant 0 : i32
    %c0_i32_1 = arith.constant 0 : i32
    return %arg0, %c0_i32, %c0_i32_0 : i32, i32, i32
  }
  func.func @transform_2(%arg0: i32) -> (i32, i32) {
    %c0_i32 = arith.constant 0 : i32
    %c0_i32_0 = arith.constant 0 : i32
    %c0_i32_1 = arith.constant 0 : i32
    return %c0_i32, %c0_i32_0 : i32, i32
  }
  func.func @transform_3(%arg0: i32) -> (i32, i32, i32) {
    %c0_i32 = arith.constant 0 : i32
    %c0_i32_0 = arith.constant 0 : i32
    %c0_i32_1 = arith.constant 0 : i32
    %c0_i32_2 = arith.constant 0 : i32
    return %c0_i32, %c0_i32_0, %c0_i32_1 : i32, i32, i32
  }
  func.func @transform_4(%arg0: i32) -> (i32, i32) {
    %c0_i32 = arith.constant 0 : i32
    %c0_i32_0 = arith.constant 0 : i32
    %c0_i32_1 = arith.constant 0 : i32
    return %c0_i32, %c0_i32_0 : i32, i32
  }
  func.func @transform_5(%arg0: i32) -> (i32, i32) {
    %c0_i32 = arith.constant 0 : i32
    %c0_i32_0 = arith.constant 0 : i32
    %c0_i32_1 = arith.constant 0 : i32
    return %c0_i32, %c0_i32_0 : i32, i32
  }
  func.func @transform_6(%arg0: i32) -> (i32, i32) {
    %c0_i32 = arith.constant 0 : i32
    %c0_i32_0 = arith.constant 0 : i32
    %c0_i32_1 = arith.constant 0 : i32
    return %c0_i32, %c0_i32_0 : i32, i32
  }
  func.func @transform_7(%arg0: i32) -> (i32, i32) {
    %c0_i32 = arith.constant 0 : i32
    %c0_i32_0 = arith.constant 0 : i32
    %c0_i32_1 = arith.constant 0 : i32
    return %c0_i32, %c0_i32_0 : i32, i32
  }
  func.func @transform_8(%arg0: i32) -> (i32, i32) {
    %c0_i32 = arith.constant 0 : i32
    %c0_i32_0 = arith.constant 0 : i32
    %c0_i32_1 = arith.constant 0 : i32
    return %c0_i32, %c0_i32_0 : i32, i32
  }
  func.func @transform_9(%arg0: i32) -> (i32, i32) {
    %c0_i32 = arith.constant 0 : i32
    %c0_i32_0 = arith.constant 0 : i32
    %c0_i32_1 = arith.constant 0 : i32
    return %c0_i32, %c0_i32_0 : i32, i32
  }
  func.func @transform_10(%arg0: i32) -> (i32, i32) {
    %c0_i32 = arith.constant 0 : i32
    %c0_i32_0 = arith.constant 0 : i32
    %c0_i32_1 = arith.constant 0 : i32
    return %c0_i32, %c0_i32_0 : i32, i32
  }
  func.func @transform_11(%arg0: i32) -> (i32, i32, i32) {
    %c0_i32 = arith.constant 0 : i32
    %c0_i32_0 = arith.constant 0 : i32
    %c0_i32_1 = arith.constant 0 : i32
    return %arg0, %c0_i32, %c0_i32_0 : i32, i32, i32
  }
  func.func @transform_12(%arg0: i32) -> (i32, i32, i32) {
    %c0_i32 = arith.constant 0 : i32
    %c0_i32_0 = arith.constant 0 : i32
    %c0_i32_1 = arith.constant 0 : i32
    return %arg0, %c0_i32, %c0_i32_0 : i32, i32, i32
  }
}

</mosaic_0001>

<llo_original>
// kernel: regressor_ensemble_forward.1
$region0: #{regressor_ensemble_forward.1}
  #allocation0 [shape = 'u32[]', space=smem, size = 0x4, offset = 0x4, fixed_abs, tag = 'smem constant byte address 0x4 - core index']
  #allocation1 [shape = 'u32[144,128]{1,0:T(1,128)}', space=vmem, size = 0x12000, scoped, tag = 'internal scratch']
  %s0 = inlined_call_operand.vmem [shape: f32[2,8,4], index: 0, kind: input, shape index: {}]
  %s1 = inlined_call_operand.vmem [shape: f32[2,8,8], index: 1, kind: input, shape index: {}]
  %s2 = inlined_call_operand.vmem [shape: f32[4,96], index: 2, kind: input, shape index: {}]
  %s3 = inlined_call_operand.vmem [shape: f32[1,96,96], index: 3, kind: input, shape index: {}]
  %s4 = inlined_call_operand.vmem [shape: f32[4,96], index: 4, kind: input, shape index: {}]
  %s5 = inlined_call_operand.vmem [shape: f32[192,96], index: 5, kind: input, shape index: {}]
  %s6 = inlined_call_operand.vmem [shape: f32[4,96], index: 6, kind: input, shape index: {}]
  %s7 = inlined_call_operand.vmem [shape: f32[192,96], index: 7, kind: input, shape index: {}]
  %s8 = inlined_call_operand.vmem [shape: f32[96,96], index: 8, kind: input, shape index: {}]
  %s9 = inlined_call_operand.vmem [shape: f32[96,6], index: 9, kind: input, shape index: {}]
  %s10 = inlined_call_operand.vmem [shape: f32[8,96], index: 10, kind: input, shape index: {}]
  %s11 = inlined_call_operand.vmem [shape: f32[2,1,6], index: 11, kind: output, shape index: {0}]
  %s12 = inlined_call_operand.vmem [shape: f32[2,1,96], index: 12, kind: output, shape index: {1}]
  %13 = xla_tuple %s11, %s12
  %s14 = sld [smem:[#allocation0]]
  $region85: #{regressor_ensemble_forward.1} parent=0
    _
  %s16 = ssub.s32 1, %s14
  %s17 = scalar_select 0, %s16, %s14
  loop: start=0, step=1, limit=4
  $region2: #{regressor_ensemble_forward.1} parent=0 // loop_pre_header
    _
  $region3: #{regressor_ensemble_forward.1} parent=0 // loop_header
    %s19 = sphi 0, %s23
    %p20 = scmp.ge.s32.totalorder %s19, 4
    %s29 = sphi 0, %s31
    %s32 = sphi 0, %s29
    %s33 = sphi 0, %s32
    %s49 = sphi 0, %s33
    %s55 = sphi 0, %s57
    %s58 = sphi 0, %s55
    %s59 = sphi 0, %s58
    %s75 = sphi 0, %s59
    %s79 = sphi 0, %s79
    %s81 = sphi 0, %s79
    %s82 = sphi 0, %s81
    %s96 = sphi 0, %s82
    %s100 = sphi 0, %s100
    %s102 = sphi 0, %s100
    %s103 = sphi 0, %s102
    %s117 = sphi 0, %s103
    %s121 = sphi 0, %s121
    %s123 = sphi 0, %s121
    %s124 = sphi 0, %s123
    %s138 = sphi 0, %s124
    %s142 = sphi 0, %s142
    %s144 = sphi 0, %s142
    %s145 = sphi 0, %s144
    %s159 = sphi 0, %s145
    %s163 = sphi 0, %s163
    %s165 = sphi 0, %s163
    %s166 = sphi 0, %s165
    %s180 = sphi 0, %s166
    %s184 = sphi 0, %s184
    %s186 = sphi 0, %s184
    %s187 = sphi 0, %s186
    %s201 = sphi 0, %s187
    %s205 = sphi 0, %s205
    %s207 = sphi 0, %s205
    %s208 = sphi 0, %s207
    %s222 = sphi 0, %s208
    %s226 = sphi 0, %s226
    %s228 = sphi 0, %s226
    %s229 = sphi 0, %s228
    %s243 = sphi 0, %s229
    %s247 = sphi 0, %s247
    %s249 = sphi 0, %s247
    %s250 = sphi 0, %s249
    %s264 = sphi 0, %s250
    %s270 = sphi 0, %s272
    %s273 = sphi 0, %s270
    %s274 = sphi 0, %s273
    %s290 = sphi 0, %s274
    %s296 = sphi 0, %s298
    %s299 = sphi 0, %s296
    %s300 = sphi 0, %s299
    %s316 = sphi 0, %s300
  $region4: #{regressor_ensemble_forward.1} parent=0 // loop_header_branch
    %22 = sbr.rel (%p20) target = $region8
  $region5: #{regressor_ensemble_forward.1} parent=0 // loop_body
    %s24 = ssub.s32 %s19, 1
    %s25 = ssub.s32 %s19, 2
    %s26 = sadd.s32 %s19, 1
    %s27 = ssub.s32 %s19, %s26
    %p28 = scmp.eq.s32.totalorder %s27, 0
    %s30 = sadd.s32 %s29, 1
    %s31 = scalar_select %p28, %s29, %s30
    %p34 = pneg %p28
    %p35 = scmp.eq.s32.totalorder %s19, 1
    %p36 = por %p34, %p35
    %p37 = scmp.ne.s32.totalorder %s29, %s32
    %p38 = scmp.eq.s32.totalorder %s19, 0
    %p39 = por %p37, %p38
    %p40 = scmp.ne.s32.totalorder %s29, %s32
    %p41 = scmp.eq.s32.totalorder %s24, 1
    %p42 = por %p40, %p41
    %p43 = scmp.ne.s32.totalorder %s32, %s33
    %p44 = scmp.eq.s32.totalorder %s24, 0
    %p45 = por %p43, %p44
    %p46 = scmp.ne.s32.totalorder %s32, %s33
    %p47 = scmp.eq.s32.totalorder %s25, 1
    %p48 = por %p46, %p47
    %p50 = scmp.ne.s32.totalorder %s33, %s49
    %p51 = scmp.eq.s32.totalorder %s25, 0
    %p52 = por %p50, %p51
    %s53 = ssub.s32 %s19, %s26
    %p54 = scmp.eq.s32.totalorder %s53, 0
    %s56 = sadd.s32 %s55, 1
    %s57 = scalar_select %p54, %s55, %s56
    %p60 = pneg %p54
    %p61 = scmp.eq.s32.totalorder %s19, 1
    %p62 = por %p60, %p61
    %p63 = scmp.ne.s32.totalorder %s55, %s58
    %p64 = scmp.eq.s32.totalorder %s19, 0
    %p65 = por %p63, %p64
    %p66 = scmp.ne.s32.totalorder %s55, %s58
    %p67 = scmp.eq.s32.totalorder %s24, 1
    %p68 = por %p66, %p67
    %p69 = scmp.ne.s32.totalorder %s58, %s59
    %p70 = scmp.eq.s32.totalorder %s24, 0
    %p71 = por %p69, %p70
    %p72 = scmp.ne.s32.totalorder %s58, %s59
    %p73 = scmp.eq.s32.totalorder %s25, 1
    %p74 = por %p72, %p73
    %p76 = scmp.ne.s32.totalorder %s59, %s75
    %p77 = scmp.eq.s32.totalorder %s25, 0
    %p78 = por %p76, %p77
    %s80 = sadd.s32 %s79, 1
    %p83 = scmp.eq.s32.totalorder %s19, 1
    %p84 = scmp.ne.s32.totalorder %s79, %s81
    %p85 = scmp.eq.s32.totalorder %s19, 0
    %p86 = por %p84, %p85
    %p87 = scmp.ne.s32.totalorder %s79, %s81
    %p88 = scmp.eq.s32.totalorder %s24, 1
    %p89 = por %p87, %p88
    %p90 = scmp.ne.s32.totalorder %s81, %s82
    %p91 = scmp.eq.s32.totalorder %s24, 0
    %p92 = por %p90, %p91
    %p93 = scmp.ne.s32.totalorder %s81, %s82
    %p94 = scmp.eq.s32.totalorder %s25, 1
    %p95 = por %p93, %p94
    %p97 = scmp.ne.s32.totalorder %s82, %s96
    %p98 = scmp.eq.s32.totalorder %s25, 0
    %p99 = por %p97, %p98
    %s101 = sadd.s32 %s100, 1
    %p104 = scmp.eq.s32.totalorder %s19, 1
    %p105 = scmp.ne.s32.totalorder %s100, %s102
    %p106 = scmp.eq.s32.totalorder %s19, 0
    %p107 = por %p105, %p106
    %p108 = scmp.ne.s32.totalorder %s100, %s102
    %p109 = scmp.eq.s32.totalorder %s24, 1
    %p110 = por %p108, %p109
    %p111 = scmp.ne.s32.totalorder %s102, %s103
    %p112 = scmp.eq.s32.totalorder %s24, 0
    %p113 = por %p111, %p112
    %p114 = scmp.ne.s32.totalorder %s102, %s103
    %p115 = scmp.eq.s32.totalorder %s25, 1
    %p116 = por %p114, %p115
    %p118 = scmp.ne.s32.totalorder %s103, %s117
    %p119 = scmp.eq.s32.totalorder %s25, 0
    %p120 = por %p118, %p119
    %s122 = sadd.s32 %s121, 1
    %p125 = scmp.eq.s32.totalorder %s19, 1
    %p126 = scmp.ne.s32.totalorder %s121, %s123
    %p127 = scmp.eq.s32.totalorder %s19, 0
    %p128 = por %p126, %p127
    %p129 = scmp.ne.s32.totalorder %s121, %s123
    %p130 = scmp.eq.s32.totalorder %s24, 1
    %p131 = por %p129, %p130
    %p132 = scmp.ne.s32.totalorder %s123, %s124
    %p133 = scmp.eq.s32.totalorder %s24, 0
    %p134 = por %p132, %p133
    %p135 = scmp.ne.s32.totalorder %s123, %s124
    %p136 = scmp.eq.s32.totalorder %s25, 1
    %p137 = por %p135, %p136
    %p139 = scmp.ne.s32.totalorder %s124, %s138
    %p140 = scmp.eq.s32.totalorder %s25, 0
    %p141 = por %p139, %p140
    %s143 = sadd.s32 %s142, 1
    %p146 = scmp.eq.s32.totalorder %s19, 1
    %p147 = scmp.ne.s32.totalorder %s142, %s144
    %p148 = scmp.eq.s32.totalorder %s19, 0
    %p149 = por %p147, %p148
    %p150 = scmp.ne.s32.totalorder %s142, %s144
    %p151 = scmp.eq.s32.totalorder %s24, 1
    %p152 = por %p150, %p151
    %p153 = scmp.ne.s32.totalorder %s144, %s145
    %p154 = scmp.eq.s32.totalorder %s24, 0
    %p155 = por %p153, %p154
    %p156 = scmp.ne.s32.totalorder %s144, %s145
    %p157 = scmp.eq.s32.totalorder %s25, 1
    %p158 = por %p156, %p157
    %p160 = scmp.ne.s32.totalorder %s145, %s159
    %p161 = scmp.eq.s32.totalorder %s25, 0
    %p162 = por %p160, %p161
    %s164 = sadd.s32 %s163, 1
    %p167 = scmp.eq.s32.totalorder %s19, 1
    %p168 = scmp.ne.s32.totalorder %s163, %s165
    %p169 = scmp.eq.s32.totalorder %s19, 0
    %p170 = por %p168, %p169
    %p171 = scmp.ne.s32.totalorder %s163, %s165
    %p172 = scmp.eq.s32.totalorder %s24, 1
    %p173 = por %p171, %p172
    %p174 = scmp.ne.s32.totalorder %s165, %s166
    %p175 = scmp.eq.s32.totalorder %s24, 0
    %p176 = por %p174, %p175
    %p177 = scmp.ne.s32.totalorder %s165, %s166
    %p178 = scmp.eq.s32.totalorder %s25, 1
    %p179 = por %p177, %p178
    %p181 = scmp.ne.s32.totalorder %s166, %s180
    %p182 = scmp.eq.s32.totalorder %s25, 0
    %p183 = por %p181, %p182
    %s185 = sadd.s32 %s184, 1
    %p188 = scmp.eq.s32.totalorder %s19, 1
    %p189 = scmp.ne.s32.totalorder %s184, %s186
    %p190 = scmp.eq.s32.totalorder %s19, 0
    %p191 = por %p189, %p190
    %p192 = scmp.ne.s32.totalorder %s184, %s186
    %p193 = scmp.eq.s32.totalorder %s24, 1
    %p194 = por %p192, %p193
    %p195 = scmp.ne.s32.totalorder %s186, %s187
    %p196 = scmp.eq.s32.totalorder %s24, 0
    %p197 = por %p195, %p196
    %p198 = scmp.ne.s32.totalorder %s186, %s187
    %p199 = scmp.eq.s32.totalorder %s25, 1
    %p200 = por %p198, %p199
    %p202 = scmp.ne.s32.totalorder %s187, %s201
    %p203 = scmp.eq.s32.totalorder %s25, 0
    %p204 = por %p202, %p203
    %s206 = sadd.s32 %s205, 1
    %p209 = scmp.eq.s32.totalorder %s19, 1
    %p210 = scmp.ne.s32.totalorder %s205, %s207
    %p211 = scmp.eq.s32.totalorder %s19, 0
    %p212 = por %p210, %p211
    %p213 = scmp.ne.s32.totalorder %s205, %s207
    %p214 = scmp.eq.s32.totalorder %s24, 1
    %p215 = por %p213, %p214
    %p216 = scmp.ne.s32.totalorder %s207, %s208
    %p217 = scmp.eq.s32.totalorder %s24, 0
    %p218 = por %p216, %p217
    %p219 = scmp.ne.s32.totalorder %s207, %s208
    %p220 = scmp.eq.s32.totalorder %s25, 1
    %p221 = por %p219, %p220
    %p223 = scmp.ne.s32.totalorder %s208, %s222
    %p224 = scmp.eq.s32.totalorder %s25, 0
    %p225 = por %p223, %p224
    %s227 = sadd.s32 %s226, 1
    %p230 = scmp.eq.s32.totalorder %s19, 1
    %p231 = scmp.ne.s32.totalorder %s226, %s228
    %p232 = scmp.eq.s32.totalorder %s19, 0
    %p233 = por %p231, %p232
    %p234 = scmp.ne.s32.totalorder %s226, %s228
    %p235 = scmp.eq.s32.totalorder %s24, 1
    %p236 = por %p234, %p235
    %p237 = scmp.ne.s32.totalorder %s228, %s229
    %p238 = scmp.eq.s32.totalorder %s24, 0
    %p239 = por %p237, %p238
    %p240 = scmp.ne.s32.totalorder %s228, %s229
    %p241 = scmp.eq.s32.totalorder %s25, 1
    %p242 = por %p240, %p241
    %p244 = scmp.ne.s32.totalorder %s229, %s243
    %p245 = scmp.eq.s32.totalorder %s25, 0
    %p246 = por %p244, %p245
    %s248 = sadd.s32 %s247, 1
    %p251 = scmp.eq.s32.totalorder %s19, 1
    %p252 = scmp.ne.s32.totalorder %s247, %s249
    %p253 = scmp.eq.s32.totalorder %s19, 0
    %p254 = por %p252, %p253
    %p255 = scmp.ne.s32.totalorder %s247, %s249
    %p256 = scmp.eq.s32.totalorder %s24, 1
    %p257 = por %p255, %p256
    %p258 = scmp.ne.s32.totalorder %s249, %s250
    %p259 = scmp.eq.s32.totalorder %s24, 0
    %p260 = por %p258, %p259
    %p261 = scmp.ne.s32.totalorder %s249, %s250
    %p262 = scmp.eq.s32.totalorder %s25, 1
    %p263 = por %p261, %p262
    %p265 = scmp.ne.s32.totalorder %s250, %s264
    %p266 = scmp.eq.s32.totalorder %s25, 0
    %p267 = por %p265, %p266
    %s268 = ssub.s32 %s19, %s26
    %p269 = scmp.eq.s32.totalorder %s268, 0
    %s271 = sadd.s32 %s270, 1
    %s272 = scalar_select %p269, %s270, %s271
    %p275 = pneg %p269
    %p276 = scmp.eq.s32.totalorder %s19, 1
    %p277 = por %p275, %p276
    %p278 = scmp.ne.s32.totalorder %s270, %s273
    %p279 = scmp.eq.s32.totalorder %s19, 0
    %p280 = por %p278, %p279
    %p281 = scmp.ne.s32.totalorder %s270, %s273
    %p282 = scmp.eq.s32.totalorder %s24, 1
    %p283 = por %p281, %p282
    %p284 = scmp.ne.s32.totalorder %s273, %s274
    %p285 = scmp.eq.s32.totalorder %s24, 0
    %p286 = por %p284, %p285
    %p287 = scmp.ne.s32.totalorder %s273, %s274
    %p288 = scmp.eq.s32.totalorder %s25, 1
    %p289 = por %p287, %p288
    %p291 = scmp.ne.s32.totalorder %s274, %s290
    %p292 = scmp.eq.s32.totalorder %s25, 0
    %p293 = por %p291, %p292
    %s294 = ssub.s32 %s19, %s26
    %p295 = scmp.eq.s32.totalorder %s294, 0
    %s297 = sadd.s32 %s296, 1
    %s298 = scalar_select %p295, %s296, %s297
    %p301 = pneg %p295
    %p302 = scmp.eq.s32.totalorder %s19, 1
    %p303 = por %p301, %p302
    %p304 = scmp.ne.s32.totalorder %s296, %s299
    %p305 = scmp.eq.s32.totalorder %s19, 0
    %p306 = por %p304, %p305
    %p307 = scmp.ne.s32.totalorder %s296, %s299
    %p308 = scmp.eq.s32.totalorder %s24, 1
    %p309 = por %p307, %p308
    %p310 = scmp.ne.s32.totalorder %s299, %s300
    %p311 = scmp.eq.s32.totalorder %s24, 0
    %p312 = por %p310, %p311
    %p313 = scmp.ne.s32.totalorder %s299, %s300
    %p314 = scmp.eq.s32.totalorder %s25, 1
    %p315 = por %p313, %p314
    %p317 = scmp.ne.s32.totalorder %s300, %s316
    %p318 = scmp.eq.s32.totalorder %s25, 0
    %p319 = por %p317, %p318
    %p320 = scmp.le.s32.totalorder 1, %s19
    %p321 = scmp.lt.s32.totalorder %s19, 3
    %p322 = pnand %p320, %p321
    %p323 = pneg %p322
    // Predicated region
    $region9: #{regressor_ensemble_forward.1} parent=5 // pred_check
      _
    $region10: #{regressor_ensemble_forward.1} parent=5 // pred_check_branch
      %325 = sbr.rel (%p322) target = $region12
    $region11: #{regressor_ensemble_forward.1} parent=5 // pred_region
      %s326 = ssub.s32 %s19, 1
      // Predicated region
      $region13: #{regressor_ensemble_forward.1} parent=11 // pred_check
        %p327 = pneg %p92
      $region14: #{regressor_ensemble_forward.1} parent=11 // pred_check_branch
        %329 = sbr.rel (%p327) target = $region16
      $region15: #{regressor_ensemble_forward.1} parent=11 // pred_region
        _
      $region16: #{regressor_ensemble_forward.1} parent=11 // pred_fallthru
        _
      // Predicated region
      $region17: #{regressor_ensemble_forward.1} parent=11 // pred_check
        %p330 = pneg %p113
      $region18: #{regressor_ensemble_forward.1} parent=11 // pred_check_branch
        %332 = sbr.rel (%p330) target = $region20
      $region19: #{regressor_ensemble_forward.1} parent=11 // pred_region
        _
      $region20: #{regressor_ensemble_forward.1} parent=11 // pred_fallthru
        _
      // Predicated region
      $region21: #{regressor_ensemble_forward.1} parent=11 // pred_check
        %p333 = pneg %p134
      $region22: #{regressor_ensemble_forward.1} parent=11 // pred_check_branch
        %335 = sbr.rel (%p333) target = $region24
      $region23: #{regressor_ensemble_forward.1} parent=11 // pred_region
        _
      $region24: #{regressor_ensemble_forward.1} parent=11 // pred_fallthru
        _
      // Predicated region
      $region25: #{regressor_ensemble_forward.1} parent=11 // pred_check
        %p336 = pneg %p155
      $region26: #{regressor_ensemble_forward.1} parent=11 // pred_check_branch
        %338 = sbr.rel (%p336) target = $region28
      $region27: #{regressor_ensemble_forward.1} parent=11 // pred_region
        _
      $region28: #{regressor_ensemble_forward.1} parent=11 // pred_fallthru
        _
      // Predicated region
      $region29: #{regressor_ensemble_forward.1} parent=11 // pred_check
        %p339 = pneg %p176
      $region30: #{regressor_ensemble_forward.1} parent=11 // pred_check_branch
        %341 = sbr.rel (%p339) target = $region32
      $region31: #{regressor_ensemble_forward.1} parent=11 // pred_region
        _
      $region32: #{regressor_ensemble_forward.1} parent=11 // pred_fallthru
        _
      // Predicated region
      $region33: #{regressor_ensemble_forward.1} parent=11 // pred_check
        %p342 = pneg %p197
      $region34: #{regressor_ensemble_forward.1} parent=11 // pred_check_branch
        %344 = sbr.rel (%p342) target = $region36
      $region35: #{regressor_ensemble_forward.1} parent=11 // pred_region
        _
      $region36: #{regressor_ensemble_forward.1} parent=11 // pred_fallthru
        _
      // Predicated region
      $region37: #{regressor_ensemble_forward.1} parent=11 // pred_check
        %p345 = pneg %p218
      $region38: #{regressor_ensemble_forward.1} parent=11 // pred_check_branch
        %347 = sbr.rel (%p345) target = $region40
      $region39: #{regressor_ensemble_forward.1} parent=11 // pred_region
        _
      $region40: #{regressor_ensemble_forward.1} parent=11 // pred_fallthru
        _
      // Predicated region
      $region41: #{regressor_ensemble_forward.1} parent=11 // pred_check
        %p348 = pneg %p239
      $region42: #{regressor_ensemble_forward.1} parent=11 // pred_check_branch
        %350 = sbr.rel (%p348) target = $region44
      $region43: #{regressor_ensemble_forward.1} parent=11 // pred_region
        _
      $region44: #{regressor_ensemble_forward.1} parent=11 // pred_fallthru
        _
      // Predicated region
      $region45: #{regressor_ensemble_forward.1} parent=11 // pred_check
        %p351 = pneg %p260
      $region46: #{regressor_ensemble_forward.1} parent=11 // pred_check_branch
        %353 = sbr.rel (%p351) target = $region48
      $region47: #{regressor_ensemble_forward.1} parent=11 // pred_region
        _
      $region48: #{regressor_ensemble_forward.1} parent=11 // pred_fallthru
        _
    $region12: #{regressor_ensemble_forward.1} parent=5 // pred_fallthru
      _
    %p354 = scmp.lt.s32.totalorder %s19, 2
    // Predicated region
    $region49: #{regressor_ensemble_forward.1} parent=5 // pred_check
      %p355 = pneg %p354
    $region50: #{regressor_ensemble_forward.1} parent=5 // pred_check_branch
      %357 = sbr.rel (%p355) target = $region52
    $region51: #{regressor_ensemble_forward.1} parent=5 // pred_region
      // Predicated region
      $region53: #{regressor_ensemble_forward.1} parent=51 // pred_check
        %p358 = pneg %p39
      $region54: #{regressor_ensemble_forward.1} parent=51 // pred_check_branch
        %360 = sbr.rel (%p358) target = $region56
      $region55: #{regressor_ensemble_forward.1} parent=51 // pred_region
        %p361 = scmp.lt.s32.totalorder %s19, 1
        %s362 = scalar_select %p361, %s19, 1
        %s363 = smul.addr %s362, 8
        %s364 = scalar_lea.vmem %s0, %s363
      $region56: #{regressor_ensemble_forward.1} parent=51 // pred_fallthru
        _
      // Predicated region
      $region57: #{regressor_ensemble_forward.1} parent=51 // pred_check
        %p365 = pneg %p65
      $region58: #{regressor_ensemble_forward.1} parent=51 // pred_check_branch
        %367 = sbr.rel (%p365) target = $region60
      $region59: #{regressor_ensemble_forward.1} parent=51 // pred_region
        %p368 = scmp.lt.s32.totalorder %s19, 1
        %s369 = scalar_select %p368, %s19, 1
        %s370 = smul.addr %s369, 8
        %s371 = scalar_lea.vmem %s1, %s370
      $region60: #{regressor_ensemble_forward.1} parent=51 // pred_fallthru
        _
    $region52: #{regressor_ensemble_forward.1} parent=5 // pred_fallthru
      _
    %p372 = scmp.le.s32.totalorder 1, %s19
    %p373 = scmp.lt.s32.totalorder %s19, 3
    %p374 = pnand %p372, %p373
    %p375 = pneg %p374
    // Predicated region
    $region61: #{regressor_ensemble_forward.1} parent=5 // pred_check
      _
    $region62: #{regressor_ensemble_forward.1} parent=5 // pred_check_branch
      %377 = sbr.rel (%p374) target = $region64
    $region63: #{regressor_ensemble_forward.1} parent=5 // pred_region
      %s378 = ssub.s32 %s19, 1
      %p379 = scmp.lt.s32.totalorder %s24, 1
      %s380 = scalar_select %p379, %s24, 1
      %s381 = smul.addr %s380, 8
      %s382 = scalar_lea.vmem %s0, %s381
      %p383 = pneg %p45
      %p384 = pneg %p42
      %p385 = scmp.lt.s32.totalorder %s24, 1
      %s386 = scalar_select %p385, %s24, 1
      %s387 = smul.addr %s386, 8
      %s388 = scalar_lea.vmem %s1, %s387
      %p389 = pneg %p71
      %p390 = pneg %p68
      %p391 = pneg %p92
      %p392 = pneg %p89
      %p393 = pneg %p113
      %p394 = pneg %p110
      %p395 = pneg %p134
      %p396 = pneg %p131
      %p397 = pneg %p155
      %p398 = pneg %p152
      %p399 = pneg %p176
      %p400 = pneg %p173
      %p401 = pneg %p197
      %p402 = pneg %p194
      %p403 = pneg %p218
      %p404 = pneg %p215
      %p405 = pneg %p239
      %p406 = pneg %p236
      %p407 = pneg %p260
      %p408 = pneg %p257
      %p409 = pneg %p286
      %p410 = pneg %p283
      %p411 = scmp.lt.s32.totalorder %s24, 1
      %s412 = scalar_select %p411, %s24, 1
      %s413 = scalar_lea.vmem %s11, %s412
      %p414 = pneg %p312
      %p415 = pneg %p309
      %p416 = scmp.lt.s32.totalorder %s24, 1
      %s417 = scalar_select %p416, %s24, 1
      %s418 = scalar_lea.vmem %s12, %s417
      %p419 = scmp.lt.s32.totalorder %s24, 1
      %s420 = scalar_select %p419, %s24, 1
      %s421 = smul.addr %s420, 8
      %s422 = scalar_lea.vmem %s0, %s421
      %p423 = scmp.lt.s32.totalorder %s24, 1
      %s424 = scalar_select %p423, %s24, 1
      %s425 = smul.addr %s424, 8
      %s426 = scalar_lea.vmem %s1, %s425
      %p427 = scmp.lt.s32.totalorder %s24, 1
      %s428 = scalar_select %p427, %s24, 1
      %s429 = scalar_lea.vmem %s11, %s428
      %p430 = scmp.lt.s32.totalorder %s24, 1
      %s431 = scalar_select %p430, %s24, 1
      %s432 = scalar_lea.vmem %s12, %s431
      %v433 = vld [vmem:[%s422] sm:$0xff]
      %v434 = vld [vmem:[%s426] sm:$0xff]
      %v435 = vld [vmem:[%s2] sm:$0xf]
      %v436 = vld [vmem:[%s10] sm:$0x1]
      %v437 = vlaneseq
      %v438 = vshrl.u32 %v437, 7
      %v439 = vsub.s32 0, %v438
      %v440 = vrot.slane %v436, %v439
      %vm441 = vcmask 31744
      %v443 = vsel %vm441, %v433, 0
      %vm445 = vcmask 1043456
      %v447 = vsel %vm445, %v435, 0
      %449 = vmatprep.subr.mxu0 0.0
      %450 = vmatpush1.msra.mxu0 0.0
      %451 = vmatprep.subr.mxu0 0.0
      %452 = vmatpush1.msra.mxu0 0.0
      %453 = vmatprep.subr.mxu0 0.0
      %454 = vmatpush1.msra.mxu0 0.0
      %455 = vmatprep.subr.mxu0 0.0
      %456 = vmatpush1.msra.mxu0 0.0
      %457 = vmatprep.subr.mxu0 0.0
      %458 = vmatpush1.msra.mxu0 0.0
      %459 = vmatprep.subr.mxu0 0.0
      %460 = vmatpush1.msra.mxu0 0.0
      %461 = vmatprep.subr.mxu0 0.0
      %462 = vmatpush1.msra.mxu0 0.0
      %463 = vmatprep.subr.mxu0 0.0
      %464 = vmatpush1.msra.mxu0 0.0
      %465 = vmatprep.subr.mxu0 0.0
      %466 = vmatpush1.msra.mxu0 0.0
      %467 = vmatprep.subr.mxu0 0.0
      %468 = vmatpush1.msra.mxu0 0.0
      %469 = vmatprep.subr.mxu0 0.0
      %470 = vmatpush1.msra.mxu0 0.0
      %471 = vmatprep.subr.mxu0 0.0
      %472 = vmatpush1.msra.mxu0 0.0
      %473 = vmatprep.subr.mxu0 0.0
      %474 = vmatpush1.msra.mxu0 0.0
      %475 = vmatprep.subr.mxu0 0.0
      %476 = vmatpush1.msra.mxu0 0.0
      %477 = vmatprep.subr.mxu0 0.0
      %478 = vmatpush1.msra.mxu0 0.0
      %479 = vmatprep.subr.mxu0 0.0
      %480 = vmatpush1.msra.mxu0 %v447
      %481 = vmatprep.subr.mxu0 0.0
      %482 = vmatpush2.msra.mxu0 0.0
      %483 = vmatprep.subr.mxu0 0.0
      %484 = vmatpush2.msra.mxu0 0.0
      %485 = vmatprep.subr.mxu0 0.0
      %486 = vmatpush2.msra.mxu0 0.0
      %487 = vmatprep.subr.mxu0 0.0
      %488 = vmatpush2.msra.mxu0 0.0
      %489 = vmatprep.subr.mxu0 0.0
      %490 = vmatpush2.msra.mxu0 0.0
      %491 = vmatprep.subr.mxu0 0.0
      %492 = vmatpush2.msra.mxu0 0.0
      %493 = vmatprep.subr.mxu0 0.0
      %494 = vmatpush2.msra.mxu0 0.0
      %495 = vmatprep.subr.mxu0 0.0
      %496 = vmatpush2.msra.mxu0 0.0
      %497 = vmatprep.subr.mxu0 0.0
      %498 = vmatpush2.msra.mxu0 0.0
      %499 = vmatprep.subr.mxu0 0.0
      %500 = vmatpush2.msra.mxu0 0.0
      %501 = vmatprep.subr.mxu0 0.0
      %502 = vmatpush2.msra.mxu0 0.0
      %503 = vmatprep.subr.mxu0 0.0
      %504 = vmatpush2.msra.mxu0 0.0
      %505 = vmatprep.subr.mxu0 0.0
      %506 = vmatpush2.msra.mxu0 0.0
      %507 = vmatprep.subr.mxu0 0.0
      %508 = vmatpush2.msra.mxu0 0.0
      %509 = vmatprep.subr.mxu0 0.0
      %510 = vmatpush2.msra.mxu0 0.0
      %511 = vmatprep.subr.mxu0 0.0
      %512 = vmatpush2.msra.mxu0 0.0
      %513 = vmatprep.mubr.f32.mxu0 0.0
      %514 = vmatmul.mubr.f32.gmra.mxu0 %v443
      %v515 = vpop.f32.mrf.mxu0
      %v516 = vadd.f32 %v440, %v515
      %v517 = vpop.f32.mrf.mxu0
      %518 = vdwg.mxu0
      %v519 = vld [vmem:[%s10 + $0x1] sm:$0x1]
      %v520 = vlaneseq
      %v521 = vshrl.u32 %v520, 7
      %v522 = vsub.s32 0, %v521
      %v523 = vrot.slane %v519, %v522
      %vm524 = vcmask 64512
      %v526 = vsel %vm524, %v434, 0
      %528 = vmatprep.subr.mxu0 0.0
      %529 = vmatpush1.msra.mxu0 0.0
      %530 = vmatprep.subr.mxu0 0.0
      %531 = vmatpush1.msra.mxu0 0.0
      %532 = vmatprep.subr.mxu0 0.0
      %533 = vmatpush1.msra.mxu0 0.0
      %534 = vmatprep.subr.mxu0 0.0
      %535 = vmatpush1.msra.mxu0 0.0
      %536 = vmatprep.subr.mxu0 0.0
      %537 = vmatpush1.msra.mxu0 0.0
      %538 = vmatprep.subr.mxu0 0.0
      %539 = vmatpush1.msra.mxu0 0.0
      %540 = vmatprep.subr.mxu0 0.0
      %541 = vmatpush1.msra.mxu0 0.0
      %542 = vmatprep.subr.mxu0 0.0
      %543 = vmatpush1.msra.mxu0 0.0
      %544 = vmatprep.subr.mxu0 0.0
      %545 = vmatpush1.msra.mxu0 0.0
      %546 = vmatprep.subr.mxu0 0.0
      %547 = vmatpush1.msra.mxu0 0.0
      %548 = vmatprep.subr.mxu0 0.0
      %549 = vmatpush1.msra.mxu0 0.0
      %550 = vmatprep.subr.mxu0 0.0
      %551 = vmatpush1.msra.mxu0 0.0
      %552 = vmatprep.subr.mxu0 0.0
      %553 = vmatpush1.msra.mxu0 0.0
      %554 = vmatprep.subr.mxu0 0.0
      %555 = vmatpush1.msra.mxu0 0.0
      %556 = vmatprep.subr.mxu0 0.0
      %557 = vmatpush1.msra.mxu0 0.0
      %558 = vmatprep.subr.mxu0 0.0
      %559 = vmatpush1.msra.mxu0 %v516
      %560 = vmatprep.subr.mxu0 0.0
      %561 = vmatpush2.msra.mxu0 0.0
      %562 = vmatprep.subr.mxu0 0.0
      %563 = vmatpush2.msra.mxu0 0.0
      %564 = vmatprep.subr.mxu0 0.0
      %565 = vmatpush2.msra.mxu0 0.0
      %566 = vmatprep.subr.mxu0 0.0
      %567 = vmatpush2.msra.mxu0 0.0
      %568 = vmatprep.subr.mxu0 0.0
      %569 = vmatpush2.msra.mxu0 0.0
      %570 = vmatprep.subr.mxu0 0.0
      %571 = vmatpush2.msra.mxu0 0.0
      %572 = vmatprep.subr.mxu0 0.0
      %573 = vmatpush2.msra.mxu0 0.0
      %574 = vmatprep.subr.mxu0 0.0
      %575 = vmatpush2.msra.mxu0 0.0
      %576 = vmatprep.subr.mxu0 0.0
      %577 = vmatpush2.msra.mxu0 0.0
      %578 = vmatprep.subr.mxu0 0.0
      %579 = vmatpush2.msra.mxu0 0.0
      %580 = vmatprep.subr.mxu0 0.0
      %581 = vmatpush2.msra.mxu0 0.0
      %582 = vmatprep.subr.mxu0 0.0
      %583 = vmatpush2.msra.mxu0 0.0
      %584 = vmatprep.subr.mxu0 0.0
      %585 = vmatpush2.msra.mxu0 0.0
      %586 = vmatprep.subr.mxu0 0.0
      %587 = vmatpush2.msra.mxu0 0.0
      %588 = vmatprep.subr.mxu0 0.0
      %589 = vmatpush2.msra.mxu0 0.0
      %590 = vmatprep.subr.mxu0 0.0
      %591 = vmatpush2.msra.mxu0 0.0
      %592 = vmatprep.mubr.f32.mxu0 0.0
      %593 = vmatmul.mubr.f32.gmra.mxu0 %v526
      %v594 = vpop.f32.mrf.mxu0
      %v595 = vadd.f32 %v523, %v594
      %v596 = vpop.f32.mrf.mxu0
      %597 = vdwg.mxu0
      %v598 = vtanh.pop %v595
      %v599 = vld [vmem:[%s3] sm:$0xff]
      %v600 = vld [vmem:[%s3 + $0x8] sm:$0xff]
      %v601 = vld [vmem:[%s3 + $0x10] sm:$0xff]
      %v602 = vld [vmem:[%s3 + $0x18] sm:$0xff]
      %v603 = vld [vmem:[%s3 + $0x20] sm:$0xff]
      %v604 = vld [vmem:[%s3 + $0x28] sm:$0xff]
      %v605 = vld [vmem:[%s3 + $0x30] sm:$0xff]
      %v606 = vld [vmem:[%s3 + $0x38] sm:$0xff]
      %v607 = vld [vmem:[%s3 + $0x40] sm:$0xff]
      %v608 = vld [vmem:[%s3 + $0x48] sm:$0xff]
      %v609 = vld [vmem:[%s3 + $0x50] sm:$0xff]
      %v610 = vld [vmem:[%s3 + $0x58] sm:$0xff]
      %v611 = vld [vmem:[%s10 + $0x2] sm:$0x1]
      %v612 = vlaneseq
      %v613 = vshrl.u32 %v612, 7
      %v614 = vsub.s32 0, %v613
      %v615 = vrot.slane %v611, %v614
      %vm616 = vcmask 785408
      %v618 = vsel %vm616, %v598, 0
      %620 = vmatprep.subr.mxu0 0.0
      %621 = vmatpush1.msra.mxu0 0.0
      %622 = vmatprep.subr.mxu0 0.0
      %623 = vmatpush1.msra.mxu0 0.0
      %624 = vmatprep.subr.mxu0 0.0
      %625 = vmatpush1.msra.mxu0 0.0
      %626 = vmatprep.subr.mxu0 0.0
      %627 = vmatpush1.msra.mxu0 0.0
      %628 = vmatprep.subr.mxu0 0.0
      %629 = vmatpush1.msra.mxu0 %v610
      %630 = vmatprep.subr.mxu0 0.0
      %631 = vmatpush1.msra.mxu0 %v609
      %632 = vmatprep.subr.mxu0 0.0
      %633 = vmatpush1.msra.mxu0 %v608
      %634 = vmatprep.subr.mxu0 0.0
      %635 = vmatpush1.msra.mxu0 %v607
      %636 = vmatprep.subr.mxu0 0.0
      %637 = vmatpush1.msra.mxu0 %v606
      %638 = vmatprep.subr.mxu0 0.0
      %639 = vmatpush1.msra.mxu0 %v605
      %640 = vmatprep.subr.mxu0 0.0
      %641 = vmatpush1.msra.mxu0 %v604
      %642 = vmatprep.subr.mxu0 0.0
      %643 = vmatpush1.msra.mxu0 %v603
      %644 = vmatprep.subr.mxu0 0.0
      %645 = vmatpush1.msra.mxu0 %v602
      %646 = vmatprep.subr.mxu0 0.0
      %647 = vmatpush1.msra.mxu0 %v601
      %648 = vmatprep.subr.mxu0 0.0
      %649 = vmatpush1.msra.mxu0 %v600
      %650 = vmatprep.subr.mxu0 0.0
      %651 = vmatpush1.msra.mxu0 %v599
      %652 = vmatprep.subr.mxu0 0.0
      %653 = vmatpush2.msra.mxu0 0.0
      %654 = vmatprep.subr.mxu0 0.0
      %655 = vmatpush2.msra.mxu0 0.0
      %656 = vmatprep.subr.mxu0 0.0
      %657 = vmatpush2.msra.mxu0 0.0
      %658 = vmatprep.subr.mxu0 0.0
      %659 = vmatpush2.msra.mxu0 0.0
      %660 = vmatprep.subr.mxu0 0.0
      %661 = vmatpush2.msra.mxu0 0.0
      %662 = vmatprep.subr.mxu0 0.0
      %663 = vmatpush2.msra.mxu0 0.0
      %664 = vmatprep.subr.mxu0 0.0
      %665 = vmatpush2.msra.mxu0 0.0
      %666 = vmatprep.subr.mxu0 0.0
      %667 = vmatpush2.msra.mxu0 0.0
      %668 = vmatprep.subr.mxu0 0.0
      %669 = vmatpush2.msra.mxu0 0.0
      %670 = vmatprep.subr.mxu0 0.0
      %671 = vmatpush2.msra.mxu0 0.0
      %672 = vmatprep.subr.mxu0 0.0
      %673 = vmatpush2.msra.mxu0 0.0
      %674 = vmatprep.subr.mxu0 0.0
      %675 = vmatpush2.msra.mxu0 0.0
      %676 = vmatprep.subr.mxu0 0.0
      %677 = vmatpush2.msra.mxu0 0.0
      %678 = vmatprep.subr.mxu0 0.0
      %679 = vmatpush2.msra.mxu0 0.0
      %680 = vmatprep.subr.mxu0 0.0
      %681 = vmatpush2.msra.mxu0 0.0
      %682 = vmatprep.subr.mxu0 0.0
      %683 = vmatpush2.msra.mxu0 0.0
      %684 = vmatprep.mubr.f32.mxu0 0.0
      %685 = vmatmul.mubr.f32.gmra.mxu0 %v618
      %v686 = vpop.f32.mrf.mxu0
      %v687 = vadd.f32 %v615, %v686
      %v688 = vpop.f32.mrf.mxu0
      %689 = vdwg.mxu0
      %v690 = vld [vmem:[%s10 + $0x3] sm:$0x1]
      %v691 = vlaneseq
      %v692 = vshrl.u32 %v691, 7
      %v693 = vsub.s32 0, %v692
      %v694 = vrot.slane %v690, %v693
      %695 = vmatprep.subr.mxu0 0.0
      %696 = vmatpush1.msra.mxu0 0.0
      %697 = vmatprep.subr.mxu0 0.0
      %698 = vmatpush1.msra.mxu0 0.0
      %699 = vmatprep.subr.mxu0 0.0
      %700 = vmatpush1.msra.mxu0 0.0
      %701 = vmatprep.subr.mxu0 0.0
      %702 = vmatpush1.msra.mxu0 0.0
      %703 = vmatprep.subr.mxu0 0.0
      %704 = vmatpush1.msra.mxu0 0.0
      %705 = vmatprep.subr.mxu0 0.0
      %706 = vmatpush1.msra.mxu0 0.0
      %707 = vmatprep.subr.mxu0 0.0
      %708 = vmatpush1.msra.mxu0 0.0
      %709 = vmatprep.subr.mxu0 0.0
      %710 = vmatpush1.msra.mxu0 0.0
      %711 = vmatprep.subr.mxu0 0.0
      %712 = vmatpush1.msra.mxu0 0.0
      %713 = vmatprep.subr.mxu0 0.0
      %714 = vmatpush1.msra.mxu0 0.0
      %715 = vmatprep.subr.mxu0 0.0
      %716 = vmatpush1.msra.mxu0 0.0
      %717 = vmatprep.subr.mxu0 0.0
      %718 = vmatpush1.msra.mxu0 0.0
      %719 = vmatprep.subr.mxu0 0.0
      %720 = vmatpush1.msra.mxu0 0.0
      %721 = vmatprep.subr.mxu0 0.0
      %722 = vmatpush1.msra.mxu0 0.0
      %723 = vmatprep.subr.mxu0 0.0
      %724 = vmatpush1.msra.mxu0 0.0
      %725 = vmatprep.subr.mxu0 0.0
      %726 = vmatpush1.msra.mxu0 %v687
      %727 = vmatprep.subr.mxu0 0.0
      %728 = vmatpush2.msra.mxu0 0.0
      %729 = vmatprep.subr.mxu0 0.0
      %730 = vmatpush2.msra.mxu0 0.0
      %731 = vmatprep.subr.mxu0 0.0
      %732 = vmatpush2.msra.mxu0 0.0
      %733 = vmatprep.subr.mxu0 0.0
      %734 = vmatpush2.msra.mxu0 0.0
      %735 = vmatprep.subr.mxu0 0.0
      %736 = vmatpush2.msra.mxu0 0.0
      %737 = vmatprep.subr.mxu0 0.0
      %738 = vmatpush2.msra.mxu0 0.0
      %739 = vmatprep.subr.mxu0 0.0
      %740 = vmatpush2.msra.mxu0 0.0
      %741 = vmatprep.subr.mxu0 0.0
      %742 = vmatpush2.msra.mxu0 0.0
      %743 = vmatprep.subr.mxu0 0.0
      %744 = vmatpush2.msra.mxu0 0.0
      %745 = vmatprep.subr.mxu0 0.0
      %746 = vmatpush2.msra.mxu0 0.0
      %747 = vmatprep.subr.mxu0 0.0
      %748 = vmatpush2.msra.mxu0 0.0
      %749 = vmatprep.subr.mxu0 0.0
      %750 = vmatpush2.msra.mxu0 0.0
      %751 = vmatprep.subr.mxu0 0.0
      %752 = vmatpush2.msra.mxu0 0.0
      %753 = vmatprep.subr.mxu0 0.0
      %754 = vmatpush2.msra.mxu0 0.0
      %755 = vmatprep.subr.mxu0 0.0
      %756 = vmatpush2.msra.mxu0 0.0
      %757 = vmatprep.subr.mxu0 0.0
      %758 = vmatpush2.msra.mxu0 0.0
      %759 = vmatprep.mubr.f32.mxu0 0.0
      %760 = vmatmul.mubr.f32.gmra.mxu0 %v526
      %v761 = vpop.f32.mrf.mxu0
      %v762 = vadd.f32 %v694, %v761
      %v763 = vpop.f32.mrf.mxu0
      %764 = vdwg.mxu0
      %v765 = vtanh.pop %v762
      %767 = vrot.lane.b32.xlu0 %v765, 96
      %v768 = vpop.permute.xlu0 %767
      %v770 = vsel %vm616, %v598, %v768
      %v771 = vld [vmem:[%s4] sm:$0xf]
      %v772 = vld [vmem:[%s5] sm:$0xff]
      %v773 = vld [vmem:[%s5 + $0x8] sm:$0xff]
      %v774 = vld [vmem:[%s5 + $0x10] sm:$0xff]
      %v775 = vld [vmem:[%s5 + $0x18] sm:$0xff]
      %v776 = vld [vmem:[%s5 + $0x20] sm:$0xff]
      %v777 = vld [vmem:[%s5 + $0x28] sm:$0xff]
      %v778 = vld [vmem:[%s5 + $0x30] sm:$0xff]
      %v779 = vld [vmem:[%s5 + $0x38] sm:$0xff]
      %v780 = vld [vmem:[%s5 + $0x40] sm:$0xff]
      %v781 = vld [vmem:[%s5 + $0x48] sm:$0xff]
      %v782 = vld [vmem:[%s5 + $0x50] sm:$0xff]
      %v783 = vld [vmem:[%s5 + $0x58] sm:$0xff]
      %v784 = vld [vmem:[%s5 + $0x60] sm:$0xff]
      %v785 = vld [vmem:[%s5 + $0x68] sm:$0xff]
      %v786 = vld [vmem:[%s5 + $0x70] sm:$0xff]
      %v787 = vld [vmem:[%s5 + $0x78] sm:$0xff]
      %v788 = vld [vmem:[%s5 + $0x80] sm:$0xff]
      %v789 = vld [vmem:[%s5 + $0x88] sm:$0xff]
      %v790 = vld [vmem:[%s5 + $0x90] sm:$0xff]
      %v791 = vld [vmem:[%s5 + $0x98] sm:$0xff]
      %v792 = vld [vmem:[%s5 + $0xa0] sm:$0xff]
      %v793 = vld [vmem:[%s5 + $0xa8] sm:$0xff]
      %v794 = vld [vmem:[%s5 + $0xb0] sm:$0xff]
      %v795 = vld [vmem:[%s5 + $0xb8] sm:$0xff]
      %vm796 = vcmask 523264
      %v797 = vsel %vm796, %v768, 0
      %799 = vmatprep.subr.mxu0 0.0
      %800 = vmatpush1.msra.mxu0 %v787
      %801 = vmatprep.subr.mxu0 0.0
      %802 = vmatpush1.msra.mxu0 %v786
      %803 = vmatprep.subr.mxu0 0.0
      %804 = vmatpush1.msra.mxu0 %v785
      %805 = vmatprep.subr.mxu0 0.0
      %806 = vmatpush1.msra.mxu0 %v784
      %807 = vmatprep.subr.mxu0 0.0
      %808 = vmatpush1.msra.mxu0 %v783
      %809 = vmatprep.subr.mxu0 0.0
      %810 = vmatpush1.msra.mxu0 %v782
      %811 = vmatprep.subr.mxu0 0.0
      %812 = vmatpush1.msra.mxu0 %v781
      %813 = vmatprep.subr.mxu0 0.0
      %814 = vmatpush1.msra.mxu0 %v780
      %815 = vmatprep.subr.mxu0 0.0
      %816 = vmatpush1.msra.mxu0 %v779
      %817 = vmatprep.subr.mxu0 0.0
      %818 = vmatpush1.msra.mxu0 %v778
      %819 = vmatprep.subr.mxu0 0.0
      %820 = vmatpush1.msra.mxu0 %v777
      %821 = vmatprep.subr.mxu0 0.0
      %822 = vmatpush1.msra.mxu0 %v776
      %823 = vmatprep.subr.mxu0 0.0
      %824 = vmatpush1.msra.mxu0 %v775
      %825 = vmatprep.subr.mxu0 0.0
      %826 = vmatpush1.msra.mxu0 %v774
      %827 = vmatprep.subr.mxu0 0.0
      %828 = vmatpush1.msra.mxu0 %v773
      %829 = vmatprep.subr.mxu0 0.0
      %830 = vmatpush1.msra.mxu0 %v772
      %831 = vmatprep.subr.mxu0 0.0
      %832 = vmatpush2.msra.mxu0 0.0
      %833 = vmatprep.subr.mxu0 0.0
      %834 = vmatpush2.msra.mxu0 0.0
      %835 = vmatprep.subr.mxu0 0.0
      %836 = vmatpush2.msra.mxu0 0.0
      %837 = vmatprep.subr.mxu0 0.0
      %838 = vmatpush2.msra.mxu0 0.0
      %839 = vmatprep.subr.mxu0 0.0
      %840 = vmatpush2.msra.mxu0 0.0
      %841 = vmatprep.subr.mxu0 0.0
      %842 = vmatpush2.msra.mxu0 0.0
      %843 = vmatprep.subr.mxu0 0.0
      %844 = vmatpush2.msra.mxu0 0.0
      %845 = vmatprep.subr.mxu0 0.0
      %846 = vmatpush2.msra.mxu0 0.0
      %847 = vmatprep.subr.mxu0 0.0
      %848 = vmatpush2.msra.mxu0 %v795
      %849 = vmatprep.subr.mxu0 0.0
      %850 = vmatpush2.msra.mxu0 %v794
      %851 = vmatprep.subr.mxu0 0.0
      %852 = vmatpush2.msra.mxu0 %v793
      %853 = vmatprep.subr.mxu0 0.0
      %854 = vmatpush2.msra.mxu0 %v792
      %855 = vmatprep.subr.mxu0 0.0
      %856 = vmatpush2.msra.mxu0 %v791
      %857 = vmatprep.subr.mxu0 0.0
      %858 = vmatpush2.msra.mxu0 %v790
      %859 = vmatprep.subr.mxu0 0.0
      %860 = vmatpush2.msra.mxu0 %v789
      %861 = vmatprep.subr.mxu0 0.0
      %862 = vmatpush2.msra.mxu0 %v788
      %863 = vmatprep.mubr.f32.mxu0 %v797
      %864 = vmatmul.mubr.f32.gmra.mxu0 %v770
      %v865 = vpop.f32.mrf.mxu0
      %v866 = vadd.f32 0.0, %v865
      %v867 = vpop.f32.mrf.mxu0
      %868 = vdwg.mxu0
      %v870 = vsel %vm445, %v771, 0
      %872 = vmatprep.subr.mxu0 0.0
      %873 = vmatpush1.msra.mxu0 0.0
      %874 = vmatprep.subr.mxu0 0.0
      %875 = vmatpush1.msra.mxu0 0.0
      %876 = vmatprep.subr.mxu0 0.0
      %877 = vmatpush1.msra.mxu0 0.0
      %878 = vmatprep.subr.mxu0 0.0
      %879 = vmatpush1.msra.mxu0 0.0
      %880 = vmatprep.subr.mxu0 0.0
      %881 = vmatpush1.msra.mxu0 0.0
      %882 = vmatprep.subr.mxu0 0.0
      %883 = vmatpush1.msra.mxu0 0.0
      %884 = vmatprep.subr.mxu0 0.0
      %885 = vmatpush1.msra.mxu0 0.0
      %886 = vmatprep.subr.mxu0 0.0
      %887 = vmatpush1.msra.mxu0 0.0
      %888 = vmatprep.subr.mxu0 0.0
      %889 = vmatpush1.msra.mxu0 0.0
      %890 = vmatprep.subr.mxu0 0.0
      %891 = vmatpush1.msra.mxu0 0.0
      %892 = vmatprep.subr.mxu0 0.0
      %893 = vmatpush1.msra.mxu0 0.0
      %894 = vmatprep.subr.mxu0 0.0
      %895 = vmatpush1.msra.mxu0 0.0
      %896 = vmatprep.subr.mxu0 0.0
      %897 = vmatpush1.msra.mxu0 0.0
      %898 = vmatprep.subr.mxu0 0.0
      %899 = vmatpush1.msra.mxu0 0.0
      %900 = vmatprep.subr.mxu0 0.0
      %901 = vmatpush1.msra.mxu0 0.0
      %902 = vmatprep.subr.mxu0 0.0
      %903 = vmatpush1.msra.mxu0 %v870
      %904 = vmatprep.subr.mxu0 0.0
      %905 = vmatpush2.msra.mxu0 0.0
      %906 = vmatprep.subr.mxu0 0.0
      %907 = vmatpush2.msra.mxu0 0.0
      %908 = vmatprep.subr.mxu0 0.0
      %909 = vmatpush2.msra.mxu0 0.0
      %910 = vmatprep.subr.mxu0 0.0
      %911 = vmatpush2.msra.mxu0 0.0
      %912 = vmatprep.subr.mxu0 0.0
      %913 = vmatpush2.msra.mxu0 0.0
      %914 = vmatprep.subr.mxu0 0.0
      %915 = vmatpush2.msra.mxu0 0.0
      %916 = vmatprep.subr.mxu0 0.0
      %917 = vmatpush2.msra.mxu0 0.0
      %918 = vmatprep.subr.mxu0 0.0
      %919 = vmatpush2.msra.mxu0 0.0
      %920 = vmatprep.subr.mxu0 0.0
      %921 = vmatpush2.msra.mxu0 0.0
      %922 = vmatprep.subr.mxu0 0.0
      %923 = vmatpush2.msra.mxu0 0.0
      %924 = vmatprep.subr.mxu0 0.0
      %925 = vmatpush2.msra.mxu0 0.0
      %926 = vmatprep.subr.mxu0 0.0
      %927 = vmatpush2.msra.mxu0 0.0
      %928 = vmatprep.subr.mxu0 0.0
      %929 = vmatpush2.msra.mxu0 0.0
      %930 = vmatprep.subr.mxu0 0.0
      %931 = vmatpush2.msra.mxu0 0.0
      %932 = vmatprep.subr.mxu0 0.0
      %933 = vmatpush2.msra.mxu0 0.0
      %934 = vmatprep.subr.mxu0 0.0
      %935 = vmatpush2.msra.mxu0 0.0
      %936 = vmatprep.mubr.f32.mxu0 0.0
      %937 = vmatmul.mubr.f32.gmra.mxu0 %v443
      %v938 = vpop.f32.mrf.mxu0
      %v939 = vadd.f32 %v866, %v938
      %v940 = vpop.f32.mrf.mxu0
      %941 = vdwg.mxu0
      %v942 = vld [vmem:[%s10 + $0x4] sm:$0x1]
      %v943 = vlaneseq
      %v944 = vshrl.u32 %v943, 7
      %v945 = vsub.s32 0, %v944
      %v946 = vrot.slane %v942, %v945
      %v947 = vadd.f32 %v939, %v946
      %v948 = vld [vmem:[%s6] sm:$0xf]
      %v949 = vld [vmem:[%s7] sm:$0xff]
      %v950 = vld [vmem:[%s7 + $0x8] sm:$0xff]
      %v951 = vld [vmem:[%s7 + $0x10] sm:$0xff]
      %v952 = vld [vmem:[%s7 + $0x18] sm:$0xff]
      %v953 = vld [vmem:[%s7 + $0x20] sm:$0xff]
      %v954 = vld [vmem:[%s7 + $0x28] sm:$0xff]
      %v955 = vld [vmem:[%s7 + $0x30] sm:$0xff]
      %v956 = vld [vmem:[%s7 + $0x38] sm:$0xff]
      %v957 = vld [vmem:[%s7 + $0x40] sm:$0xff]
      %v958 = vld [vmem:[%s7 + $0x48] sm:$0xff]
      %v959 = vld [vmem:[%s7 + $0x50] sm:$0xff]
      %v960 = vld [vmem:[%s7 + $0x58] sm:$0xff]
      %v961 = vld [vmem:[%s7 + $0x60] sm:$0xff]
      %v962 = vld [vmem:[%s7 + $0x68] sm:$0xff]
      %v963 = vld [vmem:[%s7 + $0x70] sm:$0xff]
      %v964 = vld [vmem:[%s7 + $0x78] sm:$0xff]
      %v965 = vld [vmem:[%s7 + $0x80] sm:$0xff]
      %v966 = vld [vmem:[%s7 + $0x88] sm:$0xff]
      %v967 = vld [vmem:[%s7 + $0x90] sm:$0xff]
      %v968 = vld [vmem:[%s7 + $0x98] sm:$0xff]
      %v969 = vld [vmem:[%s7 + $0xa0] sm:$0xff]
      %v970 = vld [vmem:[%s7 + $0xa8] sm:$0xff]
      %v971 = vld [vmem:[%s7 + $0xb0] sm:$0xff]
      %v972 = vld [vmem:[%s7 + $0xb8] sm:$0xff]
      %973 = vmatprep.subr.mxu0 0.0
      %974 = vmatpush1.msra.mxu0 %v964
      %975 = vmatprep.subr.mxu0 0.0
      %976 = vmatpush1.msra.mxu0 %v963
      %977 = vmatprep.subr.mxu0 0.0
      %978 = vmatpush1.msra.mxu0 %v962
      %979 = vmatprep.subr.mxu0 0.0
      %980 = vmatpush1.msra.mxu0 %v961
      %981 = vmatprep.subr.mxu0 0.0
      %982 = vmatpush1.msra.mxu0 %v960
      %983 = vmatprep.subr.mxu0 0.0
      %984 = vmatpush1.msra.mxu0 %v959
      %985 = vmatprep.subr.mxu0 0.0
      %986 = vmatpush1.msra.mxu0 %v958
      %987 = vmatprep.subr.mxu0 0.0
      %988 = vmatpush1.msra.mxu0 %v957
      %989 = vmatprep.subr.mxu0 0.0
      %990 = vmatpush1.msra.mxu0 %v956
      %991 = vmatprep.subr.mxu0 0.0
      %992 = vmatpush1.msra.mxu0 %v955
      %993 = vmatprep.subr.mxu0 0.0
      %994 = vmatpush1.msra.mxu0 %v954
      %995 = vmatprep.subr.mxu0 0.0
      %996 = vmatpush1.msra.mxu0 %v953
      %997 = vmatprep.subr.mxu0 0.0
      %998 = vmatpush1.msra.mxu0 %v952
      %999 = vmatprep.subr.mxu0 0.0
      %1000 = vmatpush1.msra.mxu0 %v951
      %1001 = vmatprep.subr.mxu0 0.0
      %1002 = vmatpush1.msra.mxu0 %v950
      %1003 = vmatprep.subr.mxu0 0.0
      %1004 = vmatpush1.msra.mxu0 %v949
      %1005 = vmatprep.subr.mxu0 0.0
      %1006 = vmatpush2.msra.mxu0 0.0
      %1007 = vmatprep.subr.mxu0 0.0
      %1008 = vmatpush2.msra.mxu0 0.0
      %1009 = vmatprep.subr.mxu0 0.0
      %1010 = vmatpush2.msra.mxu0 0.0
      %1011 = vmatprep.subr.mxu0 0.0
      %1012 = vmatpush2.msra.mxu0 0.0
      %1013 = vmatprep.subr.mxu0 0.0
      %1014 = vmatpush2.msra.mxu0 0.0
      %1015 = vmatprep.subr.mxu0 0.0
      %1016 = vmatpush2.msra.mxu0 0.0
      %1017 = vmatprep.subr.mxu0 0.0
      %1018 = vmatpush2.msra.mxu0 0.0
      %1019 = vmatprep.subr.mxu0 0.0
      %1020 = vmatpush2.msra.mxu0 0.0
      %1021 = vmatprep.subr.mxu0 0.0
      %1022 = vmatpush2.msra.mxu0 %v972
      %1023 = vmatprep.subr.mxu0 0.0
      %1024 = vmatpush2.msra.mxu0 %v971
      %1025 = vmatprep.subr.mxu0 0.0
      %1026 = vmatpush2.msra.mxu0 %v970
      %1027 = vmatprep.subr.mxu0 0.0
      %1028 = vmatpush2.msra.mxu0 %v969
      %1029 = vmatprep.subr.mxu0 0.0
      %1030 = vmatpush2.msra.mxu0 %v968
      %1031 = vmatprep.subr.mxu0 0.0
      %1032 = vmatpush2.msra.mxu0 %v967
      %1033 = vmatprep.subr.mxu0 0.0
      %1034 = vmatpush2.msra.mxu0 %v966
      %1035 = vmatprep.subr.mxu0 0.0
      %1036 = vmatpush2.msra.mxu0 %v965
      %1037 = vmatprep.mubr.f32.mxu0 %v797
      %1038 = vmatmul.mubr.f32.gmra.mxu0 %v770
      %v1039 = vpop.f32.mrf.mxu0
      %v1040 = vadd.f32 0.0, %v1039
      %v1041 = vpop.f32.mrf.mxu0
      %1042 = vdwg.mxu0
      %v1044 = vsel %vm445, %v948, 0
      %1046 = vmatprep.subr.mxu0 0.0
      %1047 = vmatpush1.msra.mxu0 0.0
      %1048 = vmatprep.subr.mxu0 0.0
      %1049 = vmatpush1.msra.mxu0 0.0
      %1050 = vmatprep.subr.mxu0 0.0
      %1051 = vmatpush1.msra.mxu0 0.0
      %1052 = vmatprep.subr.mxu0 0.0
      %1053 = vmatpush1.msra.mxu0 0.0
      %1054 = vmatprep.subr.mxu0 0.0
      %1055 = vmatpush1.msra.mxu0 0.0
      %1056 = vmatprep.subr.mxu0 0.0
      %1057 = vmatpush1.msra.mxu0 0.0
      %1058 = vmatprep.subr.mxu0 0.0
      %1059 = vmatpush1.msra.mxu0 0.0
      %1060 = vmatprep.subr.mxu0 0.0
      %1061 = vmatpush1.msra.mxu0 0.0
      %1062 = vmatprep.subr.mxu0 0.0
      %1063 = vmatpush1.msra.mxu0 0.0
      %1064 = vmatprep.subr.mxu0 0.0
      %1065 = vmatpush1.msra.mxu0 0.0
      %1066 = vmatprep.subr.mxu0 0.0
      %1067 = vmatpush1.msra.mxu0 0.0
      %1068 = vmatprep.subr.mxu0 0.0
      %1069 = vmatpush1.msra.mxu0 0.0
      %1070 = vmatprep.subr.mxu0 0.0
      %1071 = vmatpush1.msra.mxu0 0.0
      %1072 = vmatprep.subr.mxu0 0.0
      %1073 = vmatpush1.msra.mxu0 0.0
      %1074 = vmatprep.subr.mxu0 0.0
      %1075 = vmatpush1.msra.mxu0 0.0
      %1076 = vmatprep.subr.mxu0 0.0
      %1077 = vmatpush1.msra.mxu0 %v1044
      %1078 = vmatprep.subr.mxu0 0.0
      %1079 = vmatpush2.msra.mxu0 0.0
      %1080 = vmatprep.subr.mxu0 0.0
      %1081 = vmatpush2.msra.mxu0 0.0
      %1082 = vmatprep.subr.mxu0 0.0
      %1083 = vmatpush2.msra.mxu0 0.0
      %1084 = vmatprep.subr.mxu0 0.0
      %1085 = vmatpush2.msra.mxu0 0.0
      %1086 = vmatprep.subr.mxu0 0.0
      %1087 = vmatpush2.msra.mxu0 0.0
      %1088 = vmatprep.subr.mxu0 0.0
      %1089 = vmatpush2.msra.mxu0 0.0
      %1090 = vmatprep.subr.mxu0 0.0
      %1091 = vmatpush2.msra.mxu0 0.0
      %1092 = vmatprep.subr.mxu0 0.0
      %1093 = vmatpush2.msra.mxu0 0.0
      %1094 = vmatprep.subr.mxu0 0.0
      %1095 = vmatpush2.msra.mxu0 0.0
      %1096 = vmatprep.subr.mxu0 0.0
      %1097 = vmatpush2.msra.mxu0 0.0
      %1098 = vmatprep.subr.mxu0 0.0
      %1099 = vmatpush2.msra.mxu0 0.0
      %1100 = vmatprep.subr.mxu0 0.0
      %1101 = vmatpush2.msra.mxu0 0.0
      %1102 = vmatprep.subr.mxu0 0.0
      %1103 = vmatpush2.msra.mxu0 0.0
      %1104 = vmatprep.subr.mxu0 0.0
      %1105 = vmatpush2.msra.mxu0 0.0
      %1106 = vmatprep.subr.mxu0 0.0
      %1107 = vmatpush2.msra.mxu0 0.0
      %1108 = vmatprep.subr.mxu0 0.0
      %1109 = vmatpush2.msra.mxu0 0.0
      %1110 = vmatprep.mubr.f32.mxu0 0.0
      %1111 = vmatmul.mubr.f32.gmra.mxu0 %v443
      %v1112 = vpop.f32.mrf.mxu0
      %v1113 = vadd.f32 %v1040, %v1112
      %v1114 = vpop.f32.mrf.mxu0
      %1115 = vdwg.mxu0
      %v1116 = vld [vmem:[%s10 + $0x5] sm:$0x1]
      %v1117 = vlaneseq
      %v1118 = vshrl.u32 %v1117, 7
      %v1119 = vsub.s32 0, %v1118
      %v1120 = vrot.slane %v1116, %v1119
      %v1121 = vadd.f32 %v1113, %v1120
      %v1122 = vand.u32 2147483647, %v947
      %v1123 = vsub.f32 0.0, %v1122
      %v1124 = vmul.f32 %v1123, 1.442695
      %v1125 = vpow.pop %v1124
      %v1126 = vadd.f32 %v1125, 1.0
      %v1127 = vrcp.pop %v1126
      %v1128 = vmul.f32 1.0, %v1127
      %vm1129 = vcmp.ge.f32.partialorder %v947, 0.0
      %v1130 = vsub.f32 1.0, %v1128
      %v1131 = vsel %vm1129, %v1128, %v1130
      %v1132 = vtanh.pop %v1121
      %v1133 = vmul.f32 %v1131, %v1132
      %v1134 = vsel %vm616, %v1133, 0.0
      %v1135 = vrot.slane %v1134, 4
      %v1136 = vadd.f32 %v1134, %v1135
      %v1137 = vrot.slane %v1136, 2
      %v1138 = vadd.f32 %v1136, %v1137
      %v1139 = vrot.slane %v1138, 1
      %v1140 = vadd.f32 %v1138, %v1139
      %v1141 = vtanh.pop %v1140
      %vm1142 = vcmask 778240
      %1143 = vst.msk [vmem:[%s432] sm:$0x1] %vm1142, %v1141
      %v1144 = vld [vmem:[%s8] sm:$0xff]
      %v1145 = vld [vmem:[%s8 + $0x8] sm:$0xff]
      %v1146 = vld [vmem:[%s8 + $0x10] sm:$0xff]
      %v1147 = vld [vmem:[%s8 + $0x18] sm:$0xff]
      %v1148 = vld [vmem:[%s8 + $0x20] sm:$0xff]
      %v1149 = vld [vmem:[%s8 + $0x28] sm:$0xff]
      %v1150 = vld [vmem:[%s8 + $0x30] sm:$0xff]
      %v1151 = vld [vmem:[%s8 + $0x38] sm:$0xff]
      %v1152 = vld [vmem:[%s8 + $0x40] sm:$0xff]
      %v1153 = vld [vmem:[%s8 + $0x48] sm:$0xff]
      %v1154 = vld [vmem:[%s8 + $0x50] sm:$0xff]
      %v1155 = vld [vmem:[%s8 + $0x58] sm:$0xff]
      %v1156 = vld [vmem:[%s10 + $0x6] sm:$0x1]
      %v1158 = vsel %vm616, %v1141, 0
      %1160 = vmatprep.subr.mxu0 0.0
      %1161 = vmatpush1.msra.mxu0 0.0
      %1162 = vmatprep.subr.mxu0 0.0
      %1163 = vmatpush1.msra.mxu0 0.0
      %1164 = vmatprep.subr.mxu0 0.0
      %1165 = vmatpush1.msra.mxu0 0.0
      %1166 = vmatprep.subr.mxu0 0.0
      %1167 = vmatpush1.msra.mxu0 0.0
      %1168 = vmatprep.subr.mxu0 0.0
      %1169 = vmatpush1.msra.mxu0 %v1155
      %1170 = vmatprep.subr.mxu0 0.0
      %1171 = vmatpush1.msra.mxu0 %v1154
      %1172 = vmatprep.subr.mxu0 0.0
      %1173 = vmatpush1.msra.mxu0 %v1153
      %1174 = vmatprep.subr.mxu0 0.0
      %1175 = vmatpush1.msra.mxu0 %v1152
      %1176 = vmatprep.subr.mxu0 0.0
      %1177 = vmatpush1.msra.mxu0 %v1151
      %1178 = vmatprep.subr.mxu0 0.0
      %1179 = vmatpush1.msra.mxu0 %v1150
      %1180 = vmatprep.subr.mxu0 0.0
      %1181 = vmatpush1.msra.mxu0 %v1149
      %1182 = vmatprep.subr.mxu0 0.0
      %1183 = vmatpush1.msra.mxu0 %v1148
      %1184 = vmatprep.subr.mxu0 0.0
      %1185 = vmatpush1.msra.mxu0 %v1147
      %1186 = vmatprep.subr.mxu0 0.0
      %1187 = vmatpush1.msra.mxu0 %v1146
      %1188 = vmatprep.subr.mxu0 0.0
      %1189 = vmatpush1.msra.mxu0 %v1145
      %1190 = vmatprep.subr.mxu0 0.0
      %1191 = vmatpush1.msra.mxu0 %v1144
      %1192 = vmatprep.subr.mxu0 0.0
      %1193 = vmatpush2.msra.mxu0 0.0
      %1194 = vmatprep.subr.mxu0 0.0
      %1195 = vmatpush2.msra.mxu0 0.0
      %1196 = vmatprep.subr.mxu0 0.0
      %1197 = vmatpush2.msra.mxu0 0.0
      %1198 = vmatprep.subr.mxu0 0.0
      %1199 = vmatpush2.msra.mxu0 0.0
      %1200 = vmatprep.subr.mxu0 0.0
      %1201 = vmatpush2.msra.mxu0 0.0
      %1202 = vmatprep.subr.mxu0 0.0
      %1203 = vmatpush2.msra.mxu0 0.0
      %1204 = vmatprep.subr.mxu0 0.0
      %1205 = vmatpush2.msra.mxu0 0.0
      %1206 = vmatprep.subr.mxu0 0.0
      %1207 = vmatpush2.msra.mxu0 0.0
      %1208 = vmatprep.subr.mxu0 0.0
      %1209 = vmatpush2.msra.mxu0 0.0
      %1210 = vmatprep.subr.mxu0 0.0
      %1211 = vmatpush2.msra.mxu0 0.0
      %1212 = vmatprep.subr.mxu0 0.0
      %1213 = vmatpush2.msra.mxu0 0.0
      %1214 = vmatprep.subr.mxu0 0.0
      %1215 = vmatpush2.msra.mxu0 0.0
      %1216 = vmatprep.subr.mxu0 0.0
      %1217 = vmatpush2.msra.mxu0 0.0
      %1218 = vmatprep.subr.mxu0 0.0
      %1219 = vmatpush2.msra.mxu0 0.0
      %1220 = vmatprep.subr.mxu0 0.0
      %1221 = vmatpush2.msra.mxu0 0.0
      %1222 = vmatprep.subr.mxu0 0.0
      %1223 = vmatpush2.msra.mxu0 0.0
      %1224 = vmatprep.mubr.f32.mxu0 0.0
      %1225 = vmatmul.mubr.f32.gmra.mxu0 %v1158
      %v1226 = vpop.f32.mrf.mxu0
      %v1227 = vadd.f32 %v1156, %v1226
      %v1228 = vpop.f32.mrf.mxu0
      %1229 = vdwg.mxu0
      %v1230 = vmax.f32 %v1227, 0.0
      %v1231 = vld [vmem:[%s9] sm:$0xff]
      %v1232 = vld [vmem:[%s9 + $0x8] sm:$0xff]
      %v1233 = vld [vmem:[%s9 + $0x10] sm:$0xff]
      %v1234 = vld [vmem:[%s9 + $0x18] sm:$0xff]
      %v1235 = vld [vmem:[%s9 + $0x20] sm:$0xff]
      %v1236 = vld [vmem:[%s9 + $0x28] sm:$0xff]
      %v1237 = vld [vmem:[%s9 + $0x30] sm:$0xff]
      %v1238 = vld [vmem:[%s9 + $0x38] sm:$0xff]
      %v1239 = vld [vmem:[%s9 + $0x40] sm:$0xff]
      %v1240 = vld [vmem:[%s9 + $0x48] sm:$0xff]
      %v1241 = vld [vmem:[%s9 + $0x50] sm:$0xff]
      %v1242 = vld [vmem:[%s9 + $0x58] sm:$0xff]
      %v1243 = vld [vmem:[%s10 + $0x7] sm:$0x1]
      %v1245 = vsel %vm616, %v1230, 0
      %1247 = vmatprep.subr.mxu0 0.0
      %1248 = vmatpush1.msra.mxu0 0.0
      %1249 = vmatprep.subr.mxu0 0.0
      %1250 = vmatpush1.msra.mxu0 0.0
      %1251 = vmatprep.subr.mxu0 0.0
      %1252 = vmatpush1.msra.mxu0 0.0
      %1253 = vmatprep.subr.mxu0 0.0
      %1254 = vmatpush1.msra.mxu0 0.0
      %1255 = vmatprep.subr.mxu0 0.0
      %1256 = vmatpush1.msra.mxu0 %v1242
      %1257 = vmatprep.subr.mxu0 0.0
      %1258 = vmatpush1.msra.mxu0 %v1241
      %1259 = vmatprep.subr.mxu0 0.0
      %1260 = vmatpush1.msra.mxu0 %v1240
      %1261 = vmatprep.subr.mxu0 0.0
      %1262 = vmatpush1.msra.mxu0 %v1239
      %1263 = vmatprep.subr.mxu0 0.0
      %1264 = vmatpush1.msra.mxu0 %v1238
      %1265 = vmatprep.subr.mxu0 0.0
      %1266 = vmatpush1.msra.mxu0 %v1237
      %1267 = vmatprep.subr.mxu0 0.0
      %1268 = vmatpush1.msra.mxu0 %v1236
      %1269 = vmatprep.subr.mxu0 0.0
      %1270 = vmatpush1.msra.mxu0 %v1235
      %1271 = vmatprep.subr.mxu0 0.0
      %1272 = vmatpush1.msra.mxu0 %v1234
      %1273 = vmatprep.subr.mxu0 0.0
      %1274 = vmatpush1.msra.mxu0 %v1233
      %1275 = vmatprep.subr.mxu0 0.0
      %1276 = vmatpush1.msra.mxu0 %v1232
      %1277 = vmatprep.subr.mxu0 0.0
      %1278 = vmatpush1.msra.mxu0 %v1231
      %1279 = vmatprep.subr.mxu0 0.0
      %1280 = vmatpush2.msra.mxu0 0.0
      %1281 = vmatprep.subr.mxu0 0.0
      %1282 = vmatpush2.msra.mxu0 0.0
      %1283 = vmatprep.subr.mxu0 0.0
      %1284 = vmatpush2.msra.mxu0 0.0
      %1285 = vmatprep.subr.mxu0 0.0
      %1286 = vmatpush2.msra.mxu0 0.0
      %1287 = vmatprep.subr.mxu0 0.0
      %1288 = vmatpush2.msra.mxu0 0.0
      %1289 = vmatprep.subr.mxu0 0.0
      %1290 = vmatpush2.msra.mxu0 0.0
      %1291 = vmatprep.subr.mxu0 0.0
      %1292 = vmatpush2.msra.mxu0 0.0
      %1293 = vmatprep.subr.mxu0 0.0
      %1294 = vmatpush2.msra.mxu0 0.0
      %1295 = vmatprep.subr.mxu0 0.0
      %1296 = vmatpush2.msra.mxu0 0.0
      %1297 = vmatprep.subr.mxu0 0.0
      %1298 = vmatpush2.msra.mxu0 0.0
      %1299 = vmatprep.subr.mxu0 0.0
      %1300 = vmatpush2.msra.mxu0 0.0
      %1301 = vmatprep.subr.mxu0 0.0
      %1302 = vmatpush2.msra.mxu0 0.0
      %1303 = vmatprep.subr.mxu0 0.0
      %1304 = vmatpush2.msra.mxu0 0.0
      %1305 = vmatprep.subr.mxu0 0.0
      %1306 = vmatpush2.msra.mxu0 0.0
      %1307 = vmatprep.subr.mxu0 0.0
      %1308 = vmatpush2.msra.mxu0 0.0
      %1309 = vmatprep.subr.mxu0 0.0
      %1310 = vmatpush2.msra.mxu0 0.0
      %1311 = vmatprep.mubr.f32.mxu0 0.0
      %1312 = vmatmul.mubr.f32.gmra.mxu0 %v1245
      %v1313 = vpop.f32.mrf.mxu0
      %v1314 = vadd.f32 %v1243, %v1313
      %v1315 = vpop.f32.mrf.mxu0
      %1316 = vdwg.mxu0
      %v1317 = vlaneseq
      %v1318 = vand.u32 %v1317, 127
      %v1319 = vand.u32 %v1318, 1
      %vm1320 = vcmp.eq.s32.totalorder %v1319, 0
      %v1321 = vand.u32 2147483647, %v1314
      %v1322 = vsub.f32 0.0, %v1321
      %v1323 = vmul.f32 %v1322, 1.442695
      %v1324 = vpow.pop %v1323
      %v1325 = vadd.f32 %v1324, 1.0
      %v1326 = vrcp.pop %v1325
      %v1327 = vmul.f32 1.0, %v1326
      %vm1328 = vcmp.ge.f32.partialorder %v1314, 0.0
      %v1329 = vsub.f32 1.0, %v1327
      %v1330 = vsel %vm1328, %v1327, %v1329
      %v1331 = vsel %vm1320, %v1330, %v1314
      %vm1332 = vcmask 40960
      %1333 = vst.msk [vmem:[%s429] sm:$0x1] %vm1332, %v1331
      %p1334 = scmp.lt.s32.totalorder %s24, 1
      %s1335 = scalar_select %p1334, %s24, 1
      %s1336 = scalar_lea.vmem %s11, %s1335
      %p1337 = scmp.lt.s32.totalorder %s24, 1
      %s1338 = scalar_select %p1337, %s24, 1
      %s1339 = scalar_lea.vmem %s12, %s1338
      // Predicated region
      $region65: #{regressor_ensemble_forward.1} parent=63 // pred_check
        %p1340 = pneg %p283
      $region66: #{regressor_ensemble_forward.1} parent=63 // pred_check_branch
        %1342 = sbr.rel (%p1340) target = $region68
      $region67: #{regressor_ensemble_forward.1} parent=63 // pred_region
        _
      $region68: #{regressor_ensemble_forward.1} parent=63 // pred_fallthru
        _
      // Predicated region
      $region69: #{regressor_ensemble_forward.1} parent=63 // pred_check
        %p1343 = pneg %p309
      $region70: #{regressor_ensemble_forward.1} parent=63 // pred_check_branch
        %1345 = sbr.rel (%p1343) target = $region72
      $region71: #{regressor_ensemble_forward.1} parent=63 // pred_region
        _
      $region72: #{regressor_ensemble_forward.1} parent=63 // pred_fallthru
        _
    $region64: #{regressor_ensemble_forward.1} parent=5 // pred_fallthru
      _
    %p1346 = scmp.le.s32.totalorder 2, %s19
    // Predicated region
    $region73: #{regressor_ensemble_forward.1} parent=5 // pred_check
      %p1347 = pneg %p1346
    $region74: #{regressor_ensemble_forward.1} parent=5 // pred_check_branch
      %1349 = sbr.rel (%p1347) target = $region76
    $region75: #{regressor_ensemble_forward.1} parent=5 // pred_region
      %s1350 = ssub.s32 %s19, 2
      // Predicated region
      $region77: #{regressor_ensemble_forward.1} parent=75 // pred_check
        %p1351 = pneg %p289
      $region78: #{regressor_ensemble_forward.1} parent=75 // pred_check_branch
        %1353 = sbr.rel (%p1351) target = $region80
      $region79: #{regressor_ensemble_forward.1} parent=75 // pred_region
        %p1354 = scmp.lt.s32.totalorder %s25, 1
        %s1355 = scalar_select %p1354, %s25, 1
        %s1356 = scalar_lea.vmem %s11, %s1355
      $region80: #{regressor_ensemble_forward.1} parent=75 // pred_fallthru
        _
      // Predicated region
      $region81: #{regressor_ensemble_forward.1} parent=75 // pred_check
        %p1357 = pneg %p315
      $region82: #{regressor_ensemble_forward.1} parent=75 // pred_check_branch
        %1359 = sbr.rel (%p1357) target = $region84
      $region83: #{regressor_ensemble_forward.1} parent=75 // pred_region
        %p1360 = scmp.lt.s32.totalorder %s25, 1
        %s1361 = scalar_select %p1360, %s25, 1
        %s1362 = scalar_lea.vmem %s12, %s1361
      $region84: #{regressor_ensemble_forward.1} parent=75 // pred_fallthru
        _
    $region76: #{regressor_ensemble_forward.1} parent=5 // pred_fallthru
      _
  $region6: #{regressor_ensemble_forward.1} parent=0 // loop_footer
    %s23 = sadd.s32 1, %s19
  $region7: #{regressor_ensemble_forward.1} parent=0 // loop_footer_branch
    %18 = sbr.rel target = $region3
  $region8: #{regressor_ensemble_forward.1} parent=0 // loop_exit
    _

</llo_original>
